<compile_context>
chip_gen: v7x
topology: tpu7x:2x2x1
jax: 0.10.0
libtpu: 0.0.40
codegen_flags: <defaults>
</compile_context>

<pallas_src>
import functools

import jax
import jax.numpy as jnp
from jax import lax
from jax.experimental import pallas as pl
from jax.experimental.pallas import tpu as pltpu


def _lstm1_kernel(x_ref, wb_ref, y_ref, hn_ref, cn_ref, g0_ref, h1s_ref):
    """Single-invocation forward (everything fits comfortably in VMEM).

    x_ref:   (T*Bp, IP)   time-major, batch-padded (Bp=8), feature-padded (IP=128) input
    wb_ref:  (Rp, 8H)     packed weight blob (see pack_params for the row layout)
    y_ref:   (T*Bp, IP)   padded output (Linear applied; dropout = identity)
    hn_ref:  (2, Bp, H)   final hidden state per layer (padded batch)
    cn_ref:  (2, Bp, H)   final cell state per layer
    g0_ref:  (T*Bp, 4H)   VMEM scratch: hoisted layer-0 input projection
    h1s_ref: (T*Bp, H)    VMEM scratch: per-step layer-1 outputs
    """
    Bp = hn_ref.shape[1]
    H = hn_ref.shape[2]
    H4 = 4 * H
    IP = x_ref.shape[1]
    T = x_ref.shape[0] // Bp
    f32 = jnp.float32

    # ---- static slices of the packed weight blob (single prologue DMA for all params) ----
    w_rec = wb_ref[0:2 * H, :]                              # (2H, 8H) fused recurrent block
    wih0 = wb_ref[2 * H:2 * H + IP, 0:H4]                   # (IP, 4H) layer-0 input proj
    r_out = 2 * H + IP
    wout = wb_ref[r_out:r_out + H, 0:IP]                    # (H, IP)  output Linear
    r_b = r_out + H
    b0 = wb_ref[r_b:r_b + 1, 0:H4]                          # (1, 4H)  layer-0 bias
    b1 = wb_ref[r_b:r_b + 1, H4:2 * H4]                     # (1, 4H)  layer-1 bias
    bout = wb_ref[r_b + 1:r_b + 2, 0:IP]                    # (1, IP)  Linear bias

    b1b = jnp.broadcast_to(b1, (Bp, H4))                    # hoisted (JAX doesn't CSE bcast)

    # ---- off-recurrence batched layer-0 input projection, staged in VMEM scratch ----
    g0_ref[...] = jnp.dot(x_ref[...], wih0, preferred_element_type=f32) + b0

    def lstm_gates(gates, c_prev):
        # Gate columns reordered host-side to [i, f, o, g]:
        # one sigmoid chain (3H lanes) + one tanh chain, instead of 4 EUP pushes.
        sig = jax.nn.sigmoid(gates[:, 0:3 * H])
        g = jnp.tanh(gates[:, 3 * H:H4])
        i = sig[:, 0:H]
        f = sig[:, H:2 * H]
        o = sig[:, 2 * H:3 * H]
        c_new = f * c_prev + i * g
        h_new = o * jnp.tanh(c_new)
        return h_new, c_new

    zeros = jnp.zeros((Bp, H), f32)
    h0, c0 = zeros, zeros            # layer-0 running state
    h1, c1 = zeros, zeros            # layer-1 running state
    nh0, nc0 = h0, c0

    # Fully-unrolled, layer-skewed time loop: iteration t runs layer-0 step t and
    # layer-1 step t-1 off ONE fused recurrent matmul (edges t==0 / t==T special-cased).
    for t in range(T + 1):
        if t >= 1:
            hcat = jnp.concatenate([h0, h1], axis=1)                     # (Bp, 2H)
            fused = jnp.dot(hcat, w_rec, preferred_element_type=f32)     # (Bp, 8H)
        if t < T:
            gates0 = g0_ref[t * Bp:(t + 1) * Bp, :]                      # sublane-tile slice
            if t >= 1:
                gates0 = gates0 + fused[:, 0:H4]                         # vreg-aligned slice
            nh0, nc0 = lstm_gates(gates0, c0)
        if t >= 1:
            gates1 = fused[:, H4:2 * H4] + b1b                           # vreg-aligned slice
            h1, c1 = lstm_gates(gates1, c1)
            h1s_ref[(t - 1) * Bp:t * Bp, :] = h1                         # tile-aligned store
        if t < T:
            h0, c0 = nh0, nc0

    hn_ref[0] = h0
    cn_ref[0] = c0
    hn_ref[1] = h1
    cn_ref[1] = c1

    # ---- batched output Linear (drop_layer = identity at eval), one lane-dense store ----
    y_ref[...] = jnp.dot(h1s_ref[...], wout, preferred_element_type=f32) + bout


def lstm1_forward(x, blob, *, hidden_size=64):
    """x: (B, T, I) float32 (batch_first, like the PyTorch module).

    Returns (r_out, (h_n, c_n)) with r_out (B, T, I), h_n/c_n (2, B, H).
    """
    B, T, I = x.shape
    H = hidden_size
    Bp = 8                                # pad batch to f32 sublane width
    IP = 128                              # pad feature dims to lane width
    f32 = jnp.float32

    # time-major, batch/feature padded, flattened to 2-D for dense kernel layouts
    xp = jnp.zeros((T, Bp, IP), f32).at[:, :B, :I].set(jnp.transpose(x, (1, 0, 2)))
    x2d = xp.reshape(T * Bp, IP)

    out_shapes = (
        jax.ShapeDtypeStruct((T * Bp, IP), f32),
        jax.ShapeDtypeStruct((2, Bp, H), f32),
        jax.ShapeDtypeStruct((2, Bp, H), f32),
    )
    vmem = pl.BlockSpec(memory_space=pltpu.MemorySpace.VMEM)

    y2d, h_n, c_n = pl.pallas_call(
        _lstm1_kernel,
        out_shape=out_shapes,
        in_specs=[vmem, vmem],
        out_specs=(vmem, vmem, vmem),
        scratch_shapes=[
            pltpu.VMEM((T * Bp, 4 * H), f32),   # hoisted layer-0 input projection
            pltpu.VMEM((T * Bp, H), f32),       # per-step layer-1 outputs
        ],
    )(x2d, blob)

    y = jnp.transpose(y2d.reshape(T, Bp, IP)[:, :B, :I], (1, 0, 2))
    return y, (h_n[:, :B, :], c_n[:, :B, :])


def init_raw_params(key, input_size=49, hidden_size=64):
    """Raw PyTorch-layout weights, uniform(-1/sqrt(H), 1/sqrt(H)) like nn.LSTM/nn.Linear."""
    H, I = hidden_size, input_size
    bound = float(1.0 / (H ** 0.5))
    keys = jax.random.split(key, 10)
    u = lambda kk, shape: jax.random.uniform(kk, shape, jnp.float32, -bound, bound)
    return dict(
        w_ih0=u(keys[0], (4 * H, I)), w_hh0=u(keys[1], (4 * H, H)),
        b_ih0=u(keys[2], (4 * H,)), b_hh0=u(keys[3], (4 * H,)),
        w_ih1=u(keys[4], (4 * H, H)), w_hh1=u(keys[5], (4 * H, H)),
        b_ih1=u(keys[6], (4 * H,)), b_hh1=u(keys[7], (4 * H,)),
        w_out=u(keys[8], (I, H)), b_out=u(keys[9], (I,)),
    )


def pack_params(raw, input_size=49, hidden_size=64):
    """Pack all weights/biases into one f32 blob (row layout mirrored in the kernel)."""
    H, I = hidden_size, input_size
    H4 = 4 * H
    IP = 128                      # padded input / output feature width
    LW = 8 * H                    # blob lane width = fused recurrent gate width
    f32 = jnp.float32

    def reorder(a):               # PyTorch gate blocks [i, f, g, o] -> kernel [i, f, o, g]
        return jnp.concatenate([a[0:H], a[H:2 * H], a[3 * H:4 * H], a[2 * H:3 * H]], axis=0)

    wih0 = reorder(raw["w_ih0"]).T            # (I, 4H)
    whh0 = reorder(raw["w_hh0"]).T            # (H, 4H)
    wih1 = reorder(raw["w_ih1"]).T            # (H, 4H)
    whh1 = reorder(raw["w_hh1"]).T            # (H, 4H)
    b0 = reorder(raw["b_ih0"] + raw["b_hh0"])  # (4H,)
    b1 = reorder(raw["b_ih1"] + raw["b_hh1"])  # (4H,)

    # fused recurrent block weight: [h0, h1] @ [[Whh0, Wih1], [0, Whh1]]
    w_rec = jnp.concatenate([
        jnp.concatenate([whh0, wih1], axis=1),
        jnp.concatenate([jnp.zeros((H, H4), f32), whh1], axis=1),
    ], axis=0)                                                      # (2H, 8H)

    wih0_p = jnp.zeros((IP, LW), f32).at[:I, :H4].set(wih0)         # (IP, LW)
    wout_p = jnp.zeros((H, LW), f32).at[:, :I].set(raw["w_out"].T)  # (H, LW)
    brow0 = jnp.zeros((1, LW), f32).at[0, :H4].set(b0).at[0, H4:2 * H4].set(b1)
    brow1 = jnp.zeros((1, LW), f32).at[0, :I].set(raw["b_out"])

    blob = jnp.concatenate([w_rec, wih0_p, wout_p, brow0, brow1], axis=0)
    pad_rows = (-blob.shape[0]) % 8
    if pad_rows:
        blob = jnp.concatenate([blob, jnp.zeros((pad_rows, LW), f32)], axis=0)
    return blob


def ref_forward(x, raw):
    """Pure-JAX reference (lax.scan, PyTorch gate order/layout) for validation."""
    B, T, _ = x.shape
    H = raw["w_hh0"].shape[1]

    def run_layer(inp, w_ih, w_hh, b_ih, b_hh):
        wih, whh, b = w_ih.T, w_hh.T, (b_ih + b_hh)[None, :]

        def step(carry, x_t):
            h, c = carry
            gates = x_t @ wih + h @ whh + b
            i = jax.nn.sigmoid(gates[:, 0:H])
            f = jax.nn.sigmoid(gates[:, H:2 * H])
            g = jnp.tanh(gates[:, 2 * H:3 * H])
            o = jax.nn.sigmoid(gates[:, 3 * H:4 * H])
            c = f * c + i * g
            h = o * jnp.tanh(c)
            return (h, c), h

        init = (jnp.zeros((B, H), jnp.float32), jnp.zeros((B, H), jnp.float32))
        (h, c), hs = lax.scan(step, init, jnp.transpose(inp, (1, 0, 2)))
        return jnp.transpose(hs, (1, 0, 2)), h, c

    s0, h0, c0 = run_layer(x, raw["w_ih0"], raw["w_hh0"], raw["b_ih0"], raw["b_hh0"])
    s1, h1, c1 = run_layer(s0, raw["w_ih1"], raw["w_hh1"], raw["b_ih1"], raw["b_hh1"])
    y = s1 @ raw["w_out"].T + raw["b_out"][None, None, :]
    return y, (jnp.stack([h0, h1]), jnp.stack([c0, c1]))


# TODO(synk): the is_train=False autoregressive generation branch (host-side Python loop
# over the same LSTM cell) and training-mode dropout are not implemented here; only the
# training/eval forward path (dropout = identity) is.

if __name__ == "__main__":
    B, T, I, H = 2, 8, 49, 64

    key = jax.random.PRNGKey(0)
    k_x, k_p = jax.random.split(key)
    x = jax.random.normal(k_x, (B, T, I), dtype=jnp.float32)
    raw = init_raw_params(k_p, input_size=I, hidden_size=H)
    blob = pack_params(raw, input_size=I, hidden_size=H)

    fwd = jax.jit(functools.partial(lstm1_forward, hidden_size=H))
    y, (h_n, c_n) = fwd(x, blob)
    jax.block_until_ready((y, h_n, c_n))

    y_ref, (h_ref, c_ref) = ref_forward(x, raw)

    assert y.shape == (B, T, I) and h_n.shape == (2, B, H) and c_n.shape == (2, B, H)
    assert jnp.allclose(y, y_ref, rtol=1e-4, atol=1e-4)
    assert jnp.allclose(h_n, h_ref, rtol=1e-4, atol=1e-4)
    assert jnp.allclose(c_n, c_ref, rtol=1e-4, atol=1e-4)

    print("KERNEL_OK")
</pallas_src>

<mosaic_0001>
module attributes {stable_mosaic.version = 11 : i64} {
  func.func @_lstm1_kernel(%arg0: memref<64x128xf32, #tpu.memory_space<vmem>>, %arg1: memref<328x512xf32, #tpu.memory_space<vmem>>, %arg2: memref<64x128xf32, #tpu.memory_space<vmem>>, %arg3: memref<2x8x64xf32, #tpu.memory_space<vmem>>, %arg4: memref<2x8x64xf32, #tpu.memory_space<vmem>>, %arg5: memref<64x256xf32, #tpu.memory_space<vmem>>, %arg6: memref<64x64xf32, #tpu.memory_space<vmem>>) attributes {dimension_semantics = [], scalar_prefetch = 0 : i64, scratch_operands = 2 : i64, tpu.core_type = #tpu.core_type<tc>} {
    %c0 = arith.constant 0 : index
    %c0_0 = arith.constant 0 : index
    %0 = vector.load %arg1[%c0, %c0_0] : memref<328x512xf32, #tpu.memory_space<vmem>>, vector<128x512xf32>
    %c128 = arith.constant 128 : index
    %c0_1 = arith.constant 0 : index
    %1 = vector.load %arg1[%c128, %c0_1] : memref<328x512xf32, #tpu.memory_space<vmem>>, vector<128x256xf32>
    %c256 = arith.constant 256 : index
    %c0_2 = arith.constant 0 : index
    %2 = vector.load %arg1[%c256, %c0_2] : memref<328x512xf32, #tpu.memory_space<vmem>>, vector<64x128xf32>
    %c320 = arith.constant 320 : index
    %c0_3 = arith.constant 0 : index
    %3 = vector.load %arg1[%c320, %c0_3] : memref<328x512xf32, #tpu.memory_space<vmem>>, vector<1x256xf32>
    %c320_4 = arith.constant 320 : index
    %c256_5 = arith.constant 256 : index
    %4 = vector.load %arg1[%c320_4, %c256_5] : memref<328x512xf32, #tpu.memory_space<vmem>>, vector<1x256xf32>
    %c321 = arith.constant 321 : index
    %c0_6 = arith.constant 0 : index
    %5 = vector.load %arg1[%c321, %c0_6] : memref<328x512xf32, #tpu.memory_space<vmem>>, vector<1x128xf32>
    %6 = vector.shape_cast %4 : vector<1x256xf32> to vector<1x256xf32>
    %7 = vector.broadcast %6 : vector<1x256xf32> to vector<8x256xf32>
    %c0_7 = arith.constant 0 : index
    %c0_8 = arith.constant 0 : index
    %8 = vector.load %arg0[%c0_7, %c0_8] : memref<64x128xf32, #tpu.memory_space<vmem>>, vector<64x128xf32>
    %cst = arith.constant dense<0.000000e+00> : vector<64x256xf32>
    %9 = tpu.matmul %8, %1, %cst {dimension_numbers = #tpu.dot_dimension_numbers<[1], [0], [0], [1], [0, 0, 1, 1], [], []>} : vector<64x128xf32>, vector<128x256xf32>, vector<64x256xf32> -> vector<64x256xf32>
    %10 = vector.broadcast %3 : vector<1x256xf32> to vector<64x256xf32>
    %11 = arith.addf %9, %10 : vector<64x256xf32>
    %c0_9 = arith.constant 0 : index
    %c0_10 = arith.constant 0 : index
    %12 = vector.load %arg5[%c0_9, %c0_10] : memref<64x256xf32, #tpu.memory_space<vmem>>, vector<64x256xf32>
    tpu.vector_store %arg5[%c0_9, %c0_10], %11 {strides = array<i32>} : memref<64x256xf32, #tpu.memory_space<vmem>>, vector<64x256xf32>,
    %cst_11 = arith.constant 0.000000e+00 : f32
    %13 = vector.broadcast %cst_11 : f32 to vector<8x64xf32>
    %c0_12 = arith.constant 0 : index
    %c0_13 = arith.constant 0 : index
    %14 = vector.load %arg5[%c0_12, %c0_13] : memref<64x256xf32, #tpu.memory_space<vmem>>, vector<8x256xf32>
    %15 = vector.extract_strided_slice %14 {offsets = [0, 0], sizes = [8, 192], strides = [1, 1]} : vector<8x256xf32> to vector<8x192xf32>
    %16 = arith.negf %15 : vector<8x192xf32>
    %17 = math.exp %16 : vector<8x192xf32>
    %cst_14 = arith.constant 1.000000e+00 : f32
    %18 = vector.broadcast %cst_14 : f32 to vector<8x192xf32>
    %19 = arith.addf %18, %17 : vector<8x192xf32>
    %20 = arith.divf %18, %19 : vector<8x192xf32>
    %21 = vector.extract_strided_slice %14 {offsets = [0, 192], sizes = [8, 64], strides = [1, 1]} : vector<8x256xf32> to vector<8x64xf32>
    %22 = math.tanh %21 : vector<8x64xf32>
    %23 = vector.extract_strided_slice %20 {offsets = [0, 0], sizes = [8, 64], strides = [1, 1]} : vector<8x192xf32> to vector<8x64xf32>
    %24 = vector.extract_strided_slice %20 {offsets = [0, 64], sizes = [8, 64], strides = [1, 1]} : vector<8x192xf32> to vector<8x64xf32>
    %25 = vector.extract_strided_slice %20 {offsets = [0, 128], sizes = [8, 64], strides = [1, 1]} : vector<8x192xf32> to vector<8x64xf32>
    %26 = arith.mulf %24, %13 : vector<8x64xf32>
    %27 = arith.mulf %23, %22 : vector<8x64xf32>
    %28 = arith.addf %26, %27 : vector<8x64xf32>
    %29 = math.tanh %28 : vector<8x64xf32>
    %30 = arith.mulf %25, %29 : vector<8x64xf32>
    %31 = tpu.concatenate %30, %13 in 1 : vector<8x64xf32>, vector<8x64xf32> -> vector<8x128xf32>
    %cst_15 = arith.constant dense<0.000000e+00> : vector<8x512xf32>
    %32 = tpu.matmul %31, %0, %cst_15 {dimension_numbers = #tpu.dot_dimension_numbers<[1], [0], [0], [1], [0, 0, 1, 1], [], []>} : vector<8x128xf32>, vector<128x512xf32>, vector<8x512xf32> -> vector<8x512xf32>
    %c8 = arith.constant 8 : index
    %c0_16 = arith.constant 0 : index
    %33 = vector.load %arg5[%c8, %c0_16] : memref<64x256xf32, #tpu.memory_space<vmem>>, vector<8x256xf32>
    %34 = vector.extract_strided_slice %32 {offsets = [0, 0], sizes = [8, 256], strides = [1, 1]} : vector<8x512xf32> to vector<8x256xf32>
    %35 = arith.addf %33, %34 : vector<8x256xf32>
    %36 = vector.extract_strided_slice %35 {offsets = [0, 0], sizes = [8, 192], strides = [1, 1]} : vector<8x256xf32> to vector<8x192xf32>
    %37 = arith.negf %36 : vector<8x192xf32>
    %38 = math.exp %37 : vector<8x192xf32>
    %cst_17 = arith.constant 1.000000e+00 : f32
    %39 = vector.broadcast %cst_17 : f32 to vector<8x192xf32>
    %40 = arith.addf %39, %38 : vector<8x192xf32>
    %41 = arith.divf %39, %40 : vector<8x192xf32>
    %42 = vector.extract_strided_slice %35 {offsets = [0, 192], sizes = [8, 64], strides = [1, 1]} : vector<8x256xf32> to vector<8x64xf32>
    %43 = math.tanh %42 : vector<8x64xf32>
    %44 = vector.extract_strided_slice %41 {offsets = [0, 0], sizes = [8, 64], strides = [1, 1]} : vector<8x192xf32> to vector<8x64xf32>
    %45 = vector.extract_strided_slice %41 {offsets = [0, 64], sizes = [8, 64], strides = [1, 1]} : vector<8x192xf32> to vector<8x64xf32>
    %46 = vector.extract_strided_slice %41 {offsets = [0, 128], sizes = [8, 64], strides = [1, 1]} : vector<8x192xf32> to vector<8x64xf32>
    %47 = arith.mulf %45, %28 : vector<8x64xf32>
    %48 = arith.mulf %44, %43 : vector<8x64xf32>
    %49 = arith.addf %47, %48 : vector<8x64xf32>
    %50 = math.tanh %49 : vector<8x64xf32>
    %51 = arith.mulf %46, %50 : vector<8x64xf32>
    %52 = vector.extract_strided_slice %32 {offsets = [0, 256], sizes = [8, 256], strides = [1, 1]} : vector<8x512xf32> to vector<8x256xf32>
    %53 = arith.addf %52, %7 : vector<8x256xf32>
    %54 = vector.extract_strided_slice %53 {offsets = [0, 0], sizes = [8, 192], strides = [1, 1]} : vector<8x256xf32> to vector<8x192xf32>
    %55 = arith.negf %54 : vector<8x192xf32>
    %56 = math.exp %55 : vector<8x192xf32>
    %cst_18 = arith.constant 1.000000e+00 : f32
    %57 = vector.broadcast %cst_18 : f32 to vector<8x192xf32>
    %58 = arith.addf %57, %56 : vector<8x192xf32>
    %59 = arith.divf %57, %58 : vector<8x192xf32>
    %60 = vector.extract_strided_slice %53 {offsets = [0, 192], sizes = [8, 64], strides = [1, 1]} : vector<8x256xf32> to vector<8x64xf32>
    %61 = math.tanh %60 : vector<8x64xf32>
    %62 = vector.extract_strided_slice %59 {offsets = [0, 0], sizes = [8, 64], strides = [1, 1]} : vector<8x192xf32> to vector<8x64xf32>
    %63 = vector.extract_strided_slice %59 {offsets = [0, 64], sizes = [8, 64], strides = [1, 1]} : vector<8x192xf32> to vector<8x64xf32>
    %64 = vector.extract_strided_slice %59 {offsets = [0, 128], sizes = [8, 64], strides = [1, 1]} : vector<8x192xf32> to vector<8x64xf32>
    %65 = arith.mulf %63, %13 : vector<8x64xf32>
    %66 = arith.mulf %62, %61 : vector<8x64xf32>
    %67 = arith.addf %65, %66 : vector<8x64xf32>
    %68 = math.tanh %67 : vector<8x64xf32>
    %69 = arith.mulf %64, %68 : vector<8x64xf32>
    %c0_19 = arith.constant 0 : index
    %c0_20 = arith.constant 0 : index
    %70 = vector.load %arg6[%c0_19, %c0_20] : memref<64x64xf32, #tpu.memory_space<vmem>>, vector<8x64xf32>
    tpu.vector_store %arg6[%c0_19, %c0_20], %69 {strides = array<i32>} : memref<64x64xf32, #tpu.memory_space<vmem>>, vector<8x64xf32>,
    %71 = tpu.concatenate %51, %69 in 1 : vector<8x64xf32>, vector<8x64xf32> -> vector<8x128xf32>
    %cst_21 = arith.constant dense<0.000000e+00> : vector<8x512xf32>
    %72 = tpu.matmul %71, %0, %cst_21 {dimension_numbers = #tpu.dot_dimension_numbers<[1], [0], [0], [1], [0, 0, 1, 1], [], []>} : vector<8x128xf32>, vector<128x512xf32>, vector<8x512xf32> -> vector<8x512xf32>
    %c16 = arith.constant 16 : index
    %c0_22 = arith.constant 0 : index
    %73 = vector.load %arg5[%c16, %c0_22] : memref<64x256xf32, #tpu.memory_space<vmem>>, vector<8x256xf32>
    %74 = vector.extract_strided_slice %72 {offsets = [0, 0], sizes = [8, 256], strides = [1, 1]} : vector<8x512xf32> to vector<8x256xf32>
    %75 = arith.addf %73, %74 : vector<8x256xf32>
    %76 = vector.extract_strided_slice %75 {offsets = [0, 0], sizes = [8, 192], strides = [1, 1]} : vector<8x256xf32> to vector<8x192xf32>
    %77 = arith.negf %76 : vector<8x192xf32>
    %78 = math.exp %77 : vector<8x192xf32>
    %cst_23 = arith.constant 1.000000e+00 : f32
    %79 = vector.broadcast %cst_23 : f32 to vector<8x192xf32>
    %80 = arith.addf %79, %78 : vector<8x192xf32>
    %81 = arith.divf %79, %80 : vector<8x192xf32>
    %82 = vector.extract_strided_slice %75 {offsets = [0, 192], sizes = [8, 64], strides = [1, 1]} : vector<8x256xf32> to vector<8x64xf32>
    %83 = math.tanh %82 : vector<8x64xf32>
    %84 = vector.extract_strided_slice %81 {offsets = [0, 0], sizes = [8, 64], strides = [1, 1]} : vector<8x192xf32> to vector<8x64xf32>
    %85 = vector.extract_strided_slice %81 {offsets = [0, 64], sizes = [8, 64], strides = [1, 1]} : vector<8x192xf32> to vector<8x64xf32>
    %86 = vector.extract_strided_slice %81 {offsets = [0, 128], sizes = [8, 64], strides = [1, 1]} : vector<8x192xf32> to vector<8x64xf32>
    %87 = arith.mulf %85, %49 : vector<8x64xf32>
    %88 = arith.mulf %84, %83 : vector<8x64xf32>
    %89 = arith.addf %87, %88 : vector<8x64xf32>
    %90 = math.tanh %89 : vector<8x64xf32>
    %91 = arith.mulf %86, %90 : vector<8x64xf32>
    %92 = vector.extract_strided_slice %72 {offsets = [0, 256], sizes = [8, 256], strides = [1, 1]} : vector<8x512xf32> to vector<8x256xf32>
    %93 = arith.addf %92, %7 : vector<8x256xf32>
    %94 = vector.extract_strided_slice %93 {offsets = [0, 0], sizes = [8, 192], strides = [1, 1]} : vector<8x256xf32> to vector<8x192xf32>
    %95 = arith.negf %94 : vector<8x192xf32>
    %96 = math.exp %95 : vector<8x192xf32>
    %cst_24 = arith.constant 1.000000e+00 : f32
    %97 = vector.broadcast %cst_24 : f32 to vector<8x192xf32>
    %98 = arith.addf %97, %96 : vector<8x192xf32>
    %99 = arith.divf %97, %98 : vector<8x192xf32>
    %100 = vector.extract_strided_slice %93 {offsets = [0, 192], sizes = [8, 64], strides = [1, 1]} : vector<8x256xf32> to vector<8x64xf32>
    %101 = math.tanh %100 : vector<8x64xf32>
    %102 = vector.extract_strided_slice %99 {offsets = [0, 0], sizes = [8, 64], strides = [1, 1]} : vector<8x192xf32> to vector<8x64xf32>
    %103 = vector.extract_strided_slice %99 {offsets = [0, 64], sizes = [8, 64], strides = [1, 1]} : vector<8x192xf32> to vector<8x64xf32>
    %104 = vector.extract_strided_slice %99 {offsets = [0, 128], sizes = [8, 64], strides = [1, 1]} : vector<8x192xf32> to vector<8x64xf32>
    %105 = arith.mulf %103, %67 : vector<8x64xf32>
    %106 = arith.mulf %102, %101 : vector<8x64xf32>
    %107 = arith.addf %105, %106 : vector<8x64xf32>
    %108 = math.tanh %107 : vector<8x64xf32>
    %109 = arith.mulf %104, %108 : vector<8x64xf32>
    %c8_25 = arith.constant 8 : index
    %c0_26 = arith.constant 0 : index
    %110 = vector.load %arg6[%c8_25, %c0_26] : memref<64x64xf32, #tpu.memory_space<vmem>>, vector<8x64xf32>
    tpu.vector_store %arg6[%c8_25, %c0_26], %109 {strides = array<i32>} : memref<64x64xf32, #tpu.memory_space<vmem>>, vector<8x64xf32>,
    %111 = tpu.concatenate %91, %109 in 1 : vector<8x64xf32>, vector<8x64xf32> -> vector<8x128xf32>
    %cst_27 = arith.constant dense<0.000000e+00> : vector<8x512xf32>
    %112 = tpu.matmul %111, %0, %cst_27 {dimension_numbers = #tpu.dot_dimension_numbers<[1], [0], [0], [1], [0, 0, 1, 1], [], []>} : vector<8x128xf32>, vector<128x512xf32>, vector<8x512xf32> -> vector<8x512xf32>
    %c24 = arith.constant 24 : index
    %c0_28 = arith.constant 0 : index
    %113 = vector.load %arg5[%c24, %c0_28] : memref<64x256xf32, #tpu.memory_space<vmem>>, vector<8x256xf32>
    %114 = vector.extract_strided_slice %112 {offsets = [0, 0], sizes = [8, 256], strides = [1, 1]} : vector<8x512xf32> to vector<8x256xf32>
    %115 = arith.addf %113, %114 : vector<8x256xf32>
    %116 = vector.extract_strided_slice %115 {offsets = [0, 0], sizes = [8, 192], strides = [1, 1]} : vector<8x256xf32> to vector<8x192xf32>
    %117 = arith.negf %116 : vector<8x192xf32>
    %118 = math.exp %117 : vector<8x192xf32>
    %cst_29 = arith.constant 1.000000e+00 : f32
    %119 = vector.broadcast %cst_29 : f32 to vector<8x192xf32>
    %120 = arith.addf %119, %118 : vector<8x192xf32>
    %121 = arith.divf %119, %120 : vector<8x192xf32>
    %122 = vector.extract_strided_slice %115 {offsets = [0, 192], sizes = [8, 64], strides = [1, 1]} : vector<8x256xf32> to vector<8x64xf32>
    %123 = math.tanh %122 : vector<8x64xf32>
    %124 = vector.extract_strided_slice %121 {offsets = [0, 0], sizes = [8, 64], strides = [1, 1]} : vector<8x192xf32> to vector<8x64xf32>
    %125 = vector.extract_strided_slice %121 {offsets = [0, 64], sizes = [8, 64], strides = [1, 1]} : vector<8x192xf32> to vector<8x64xf32>
    %126 = vector.extract_strided_slice %121 {offsets = [0, 128], sizes = [8, 64], strides = [1, 1]} : vector<8x192xf32> to vector<8x64xf32>
    %127 = arith.mulf %125, %89 : vector<8x64xf32>
    %128 = arith.mulf %124, %123 : vector<8x64xf32>
    %129 = arith.addf %127, %128 : vector<8x64xf32>
    %130 = math.tanh %129 : vector<8x64xf32>
    %131 = arith.mulf %126, %130 : vector<8x64xf32>
    %132 = vector.extract_strided_slice %112 {offsets = [0, 256], sizes = [8, 256], strides = [1, 1]} : vector<8x512xf32> to vector<8x256xf32>
    %133 = arith.addf %132, %7 : vector<8x256xf32>
    %134 = vector.extract_strided_slice %133 {offsets = [0, 0], sizes = [8, 192], strides = [1, 1]} : vector<8x256xf32> to vector<8x192xf32>
    %135 = arith.negf %134 : vector<8x192xf32>
    %136 = math.exp %135 : vector<8x192xf32>
    %cst_30 = arith.constant 1.000000e+00 : f32
    %137 = vector.broadcast %cst_30 : f32 to vector<8x192xf32>
    %138 = arith.addf %137, %136 : vector<8x192xf32>
    %139 = arith.divf %137, %138 : vector<8x192xf32>
    %140 = vector.extract_strided_slice %133 {offsets = [0, 192], sizes = [8, 64], strides = [1, 1]} : vector<8x256xf32> to vector<8x64xf32>
    %141 = math.tanh %140 : vector<8x64xf32>
    %142 = vector.extract_strided_slice %139 {offsets = [0, 0], sizes = [8, 64], strides = [1, 1]} : vector<8x192xf32> to vector<8x64xf32>
    %143 = vector.extract_strided_slice %139 {offsets = [0, 64], sizes = [8, 64], strides = [1, 1]} : vector<8x192xf32> to vector<8x64xf32>
    %144 = vector.extract_strided_slice %139 {offsets = [0, 128], sizes = [8, 64], strides = [1, 1]} : vector<8x192xf32> to vector<8x64xf32>
    %145 = arith.mulf %143, %107 : vector<8x64xf32>
    %146 = arith.mulf %142, %141 : vector<8x64xf32>
    %147 = arith.addf %145, %146 : vector<8x64xf32>
    %148 = math.tanh %147 : vector<8x64xf32>
    %149 = arith.mulf %144, %148 : vector<8x64xf32>
    %c16_31 = arith.constant 16 : index
    %c0_32 = arith.constant 0 : index
    %150 = vector.load %arg6[%c16_31, %c0_32] : memref<64x64xf32, #tpu.memory_space<vmem>>, vector<8x64xf32>
    tpu.vector_store %arg6[%c16_31, %c0_32], %149 {strides = array<i32>} : memref<64x64xf32, #tpu.memory_space<vmem>>, vector<8x64xf32>,
    %151 = tpu.concatenate %131, %149 in 1 : vector<8x64xf32>, vector<8x64xf32> -> vector<8x128xf32>
    %cst_33 = arith.constant dense<0.000000e+00> : vector<8x512xf32>
    %152 = tpu.matmul %151, %0, %cst_33 {dimension_numbers = #tpu.dot_dimension_numbers<[1], [0], [0], [1], [0, 0, 1, 1], [], []>} : vector<8x128xf32>, vector<128x512xf32>, vector<8x512xf32> -> vector<8x512xf32>
    %c32 = arith.constant 32 : index
    %c0_34 = arith.constant 0 : index
    %153 = vector.load %arg5[%c32, %c0_34] : memref<64x256xf32, #tpu.memory_space<vmem>>, vector<8x256xf32>
    %154 = vector.extract_strided_slice %152 {offsets = [0, 0], sizes = [8, 256], strides = [1, 1]} : vector<8x512xf32> to vector<8x256xf32>
    %155 = arith.addf %153, %154 : vector<8x256xf32>
    %156 = vector.extract_strided_slice %155 {offsets = [0, 0], sizes = [8, 192], strides = [1, 1]} : vector<8x256xf32> to vector<8x192xf32>
    %157 = arith.negf %156 : vector<8x192xf32>
    %158 = math.exp %157 : vector<8x192xf32>
    %cst_35 = arith.constant 1.000000e+00 : f32
    %159 = vector.broadcast %cst_35 : f32 to vector<8x192xf32>
    %160 = arith.addf %159, %158 : vector<8x192xf32>
    %161 = arith.divf %159, %160 : vector<8x192xf32>
    %162 = vector.extract_strided_slice %155 {offsets = [0, 192], sizes = [8, 64], strides = [1, 1]} : vector<8x256xf32> to vector<8x64xf32>
    %163 = math.tanh %162 : vector<8x64xf32>
    %164 = vector.extract_strided_slice %161 {offsets = [0, 0], sizes = [8, 64], strides = [1, 1]} : vector<8x192xf32> to vector<8x64xf32>
    %165 = vector.extract_strided_slice %161 {offsets = [0, 64], sizes = [8, 64], strides = [1, 1]} : vector<8x192xf32> to vector<8x64xf32>
    %166 = vector.extract_strided_slice %161 {offsets = [0, 128], sizes = [8, 64], strides = [1, 1]} : vector<8x192xf32> to vector<8x64xf32>
    %167 = arith.mulf %165, %129 : vector<8x64xf32>
    %168 = arith.mulf %164, %163 : vector<8x64xf32>
    %169 = arith.addf %167, %168 : vector<8x64xf32>
    %170 = math.tanh %169 : vector<8x64xf32>
    %171 = arith.mulf %166, %170 : vector<8x64xf32>
    %172 = vector.extract_strided_slice %152 {offsets = [0, 256], sizes = [8, 256], strides = [1, 1]} : vector<8x512xf32> to vector<8x256xf32>
    %173 = arith.addf %172, %7 : vector<8x256xf32>
    %174 = vector.extract_strided_slice %173 {offsets = [0, 0], sizes = [8, 192], strides = [1, 1]} : vector<8x256xf32> to vector<8x192xf32>
    %175 = arith.negf %174 : vector<8x192xf32>
    %176 = math.exp %175 : vector<8x192xf32>
    %cst_36 = arith.constant 1.000000e+00 : f32
    %177 = vector.broadcast %cst_36 : f32 to vector<8x192xf32>
    %178 = arith.addf %177, %176 : vector<8x192xf32>
    %179 = arith.divf %177, %178 : vector<8x192xf32>
    %180 = vector.extract_strided_slice %173 {offsets = [0, 192], sizes = [8, 64], strides = [1, 1]} : vector<8x256xf32> to vector<8x64xf32>
    %181 = math.tanh %180 : vector<8x64xf32>
    %182 = vector.extract_strided_slice %179 {offsets = [0, 0], sizes = [8, 64], strides = [1, 1]} : vector<8x192xf32> to vector<8x64xf32>
    %183 = vector.extract_strided_slice %179 {offsets = [0, 64], sizes = [8, 64], strides = [1, 1]} : vector<8x192xf32> to vector<8x64xf32>
    %184 = vector.extract_strided_slice %179 {offsets = [0, 128], sizes = [8, 64], strides = [1, 1]} : vector<8x192xf32> to vector<8x64xf32>
    %185 = arith.mulf %183, %147 : vector<8x64xf32>
    %186 = arith.mulf %182, %181 : vector<8x64xf32>
    %187 = arith.addf %185, %186 : vector<8x64xf32>
    %188 = math.tanh %187 : vector<8x64xf32>
    %189 = arith.mulf %184, %188 : vector<8x64xf32>
    %c24_37 = arith.constant 24 : index
    %c0_38 = arith.constant 0 : index
    %190 = vector.load %arg6[%c24_37, %c0_38] : memref<64x64xf32, #tpu.memory_space<vmem>>, vector<8x64xf32>
    tpu.vector_store %arg6[%c24_37, %c0_38], %189 {strides = array<i32>} : memref<64x64xf32, #tpu.memory_space<vmem>>, vector<8x64xf32>,
    %191 = tpu.concatenate %171, %189 in 1 : vector<8x64xf32>, vector<8x64xf32> -> vector<8x128xf32>
    %cst_39 = arith.constant dense<0.000000e+00> : vector<8x512xf32>
    %192 = tpu.matmul %191, %0, %cst_39 {dimension_numbers = #tpu.dot_dimension_numbers<[1], [0], [0], [1], [0, 0, 1, 1], [], []>} : vector<8x128xf32>, vector<128x512xf32>, vector<8x512xf32> -> vector<8x512xf32>
    %c40 = arith.constant 40 : index
    %c0_40 = arith.constant 0 : index
    %193 = vector.load %arg5[%c40, %c0_40] : memref<64x256xf32, #tpu.memory_space<vmem>>, vector<8x256xf32>
    %194 = vector.extract_strided_slice %192 {offsets = [0, 0], sizes = [8, 256], strides = [1, 1]} : vector<8x512xf32> to vector<8x256xf32>
    %195 = arith.addf %193, %194 : vector<8x256xf32>
    %196 = vector.extract_strided_slice %195 {offsets = [0, 0], sizes = [8, 192], strides = [1, 1]} : vector<8x256xf32> to vector<8x192xf32>
    %197 = arith.negf %196 : vector<8x192xf32>
    %198 = math.exp %197 : vector<8x192xf32>
    %cst_41 = arith.constant 1.000000e+00 : f32
    %199 = vector.broadcast %cst_41 : f32 to vector<8x192xf32>
    %200 = arith.addf %199, %198 : vector<8x192xf32>
    %201 = arith.divf %199, %200 : vector<8x192xf32>
    %202 = vector.extract_strided_slice %195 {offsets = [0, 192], sizes = [8, 64], strides = [1, 1]} : vector<8x256xf32> to vector<8x64xf32>
    %203 = math.tanh %202 : vector<8x64xf32>
    %204 = vector.extract_strided_slice %201 {offsets = [0, 0], sizes = [8, 64], strides = [1, 1]} : vector<8x192xf32> to vector<8x64xf32>
    %205 = vector.extract_strided_slice %201 {offsets = [0, 64], sizes = [8, 64], strides = [1, 1]} : vector<8x192xf32> to vector<8x64xf32>
    %206 = vector.extract_strided_slice %201 {offsets = [0, 128], sizes = [8, 64], strides = [1, 1]} : vector<8x192xf32> to vector<8x64xf32>
    %207 = arith.mulf %205, %169 : vector<8x64xf32>
    %208 = arith.mulf %204, %203 : vector<8x64xf32>
    %209 = arith.addf %207, %208 : vector<8x64xf32>
    %210 = math.tanh %209 : vector<8x64xf32>
    %211 = arith.mulf %206, %210 : vector<8x64xf32>
    %212 = vector.extract_strided_slice %192 {offsets = [0, 256], sizes = [8, 256], strides = [1, 1]} : vector<8x512xf32> to vector<8x256xf32>
    %213 = arith.addf %212, %7 : vector<8x256xf32>
    %214 = vector.extract_strided_slice %213 {offsets = [0, 0], sizes = [8, 192], strides = [1, 1]} : vector<8x256xf32> to vector<8x192xf32>
    %215 = arith.negf %214 : vector<8x192xf32>
    %216 = math.exp %215 : vector<8x192xf32>
    %cst_42 = arith.constant 1.000000e+00 : f32
    %217 = vector.broadcast %cst_42 : f32 to vector<8x192xf32>
    %218 = arith.addf %217, %216 : vector<8x192xf32>
    %219 = arith.divf %217, %218 : vector<8x192xf32>
    %220 = vector.extract_strided_slice %213 {offsets = [0, 192], sizes = [8, 64], strides = [1, 1]} : vector<8x256xf32> to vector<8x64xf32>
    %221 = math.tanh %220 : vector<8x64xf32>
    %222 = vector.extract_strided_slice %219 {offsets = [0, 0], sizes = [8, 64], strides = [1, 1]} : vector<8x192xf32> to vector<8x64xf32>
    %223 = vector.extract_strided_slice %219 {offsets = [0, 64], sizes = [8, 64], strides = [1, 1]} : vector<8x192xf32> to vector<8x64xf32>
    %224 = vector.extract_strided_slice %219 {offsets = [0, 128], sizes = [8, 64], strides = [1, 1]} : vector<8x192xf32> to vector<8x64xf32>
    %225 = arith.mulf %223, %187 : vector<8x64xf32>
    %226 = arith.mulf %222, %221 : vector<8x64xf32>
    %227 = arith.addf %225, %226 : vector<8x64xf32>
    %228 = math.tanh %227 : vector<8x64xf32>
    %229 = arith.mulf %224, %228 : vector<8x64xf32>
    %c32_43 = arith.constant 32 : index
    %c0_44 = arith.constant 0 : index
    %230 = vector.load %arg6[%c32_43, %c0_44] : memref<64x64xf32, #tpu.memory_space<vmem>>, vector<8x64xf32>
    tpu.vector_store %arg6[%c32_43, %c0_44], %229 {strides = array<i32>} : memref<64x64xf32, #tpu.memory_space<vmem>>, vector<8x64xf32>,
    %231 = tpu.concatenate %211, %229 in 1 : vector<8x64xf32>, vector<8x64xf32> -> vector<8x128xf32>
    %cst_45 = arith.constant dense<0.000000e+00> : vector<8x512xf32>
    %232 = tpu.matmul %231, %0, %cst_45 {dimension_numbers = #tpu.dot_dimension_numbers<[1], [0], [0], [1], [0, 0, 1, 1], [], []>} : vector<8x128xf32>, vector<128x512xf32>, vector<8x512xf32> -> vector<8x512xf32>
    %c48 = arith.constant 48 : index
    %c0_46 = arith.constant 0 : index
    %233 = vector.load %arg5[%c48, %c0_46] : memref<64x256xf32, #tpu.memory_space<vmem>>, vector<8x256xf32>
    %234 = vector.extract_strided_slice %232 {offsets = [0, 0], sizes = [8, 256], strides = [1, 1]} : vector<8x512xf32> to vector<8x256xf32>
    %235 = arith.addf %233, %234 : vector<8x256xf32>
    %236 = vector.extract_strided_slice %235 {offsets = [0, 0], sizes = [8, 192], strides = [1, 1]} : vector<8x256xf32> to vector<8x192xf32>
    %237 = arith.negf %236 : vector<8x192xf32>
    %238 = math.exp %237 : vector<8x192xf32>
    %cst_47 = arith.constant 1.000000e+00 : f32
    %239 = vector.broadcast %cst_47 : f32 to vector<8x192xf32>
    %240 = arith.addf %239, %238 : vector<8x192xf32>
    %241 = arith.divf %239, %240 : vector<8x192xf32>
    %242 = vector.extract_strided_slice %235 {offsets = [0, 192], sizes = [8, 64], strides = [1, 1]} : vector<8x256xf32> to vector<8x64xf32>
    %243 = math.tanh %242 : vector<8x64xf32>
    %244 = vector.extract_strided_slice %241 {offsets = [0, 0], sizes = [8, 64], strides = [1, 1]} : vector<8x192xf32> to vector<8x64xf32>
    %245 = vector.extract_strided_slice %241 {offsets = [0, 64], sizes = [8, 64], strides = [1, 1]} : vector<8x192xf32> to vector<8x64xf32>
    %246 = vector.extract_strided_slice %241 {offsets = [0, 128], sizes = [8, 64], strides = [1, 1]} : vector<8x192xf32> to vector<8x64xf32>
    %247 = arith.mulf %245, %209 : vector<8x64xf32>
    %248 = arith.mulf %244, %243 : vector<8x64xf32>
    %249 = arith.addf %247, %248 : vector<8x64xf32>
    %250 = math.tanh %249 : vector<8x64xf32>
    %251 = arith.mulf %246, %250 : vector<8x64xf32>
    %252 = vector.extract_strided_slice %232 {offsets = [0, 256], sizes = [8, 256], strides = [1, 1]} : vector<8x512xf32> to vector<8x256xf32>
    %253 = arith.addf %252, %7 : vector<8x256xf32>
    %254 = vector.extract_strided_slice %253 {offsets = [0, 0], sizes = [8, 192], strides = [1, 1]} : vector<8x256xf32> to vector<8x192xf32>
    %255 = arith.negf %254 : vector<8x192xf32>
    %256 = math.exp %255 : vector<8x192xf32>
    %cst_48 = arith.constant 1.000000e+00 : f32
    %257 = vector.broadcast %cst_48 : f32 to vector<8x192xf32>
    %258 = arith.addf %257, %256 : vector<8x192xf32>
    %259 = arith.divf %257, %258 : vector<8x192xf32>
    %260 = vector.extract_strided_slice %253 {offsets = [0, 192], sizes = [8, 64], strides = [1, 1]} : vector<8x256xf32> to vector<8x64xf32>
    %261 = math.tanh %260 : vector<8x64xf32>
    %262 = vector.extract_strided_slice %259 {offsets = [0, 0], sizes = [8, 64], strides = [1, 1]} : vector<8x192xf32> to vector<8x64xf32>
    %263 = vector.extract_strided_slice %259 {offsets = [0, 64], sizes = [8, 64], strides = [1, 1]} : vector<8x192xf32> to vector<8x64xf32>
    %264 = vector.extract_strided_slice %259 {offsets = [0, 128], sizes = [8, 64], strides = [1, 1]} : vector<8x192xf32> to vector<8x64xf32>
    %265 = arith.mulf %263, %227 : vector<8x64xf32>
    %266 = arith.mulf %262, %261 : vector<8x64xf32>
    %267 = arith.addf %265, %266 : vector<8x64xf32>
    %268 = math.tanh %267 : vector<8x64xf32>
    %269 = arith.mulf %264, %268 : vector<8x64xf32>
    %c40_49 = arith.constant 40 : index
    %c0_50 = arith.constant 0 : index
    %270 = vector.load %arg6[%c40_49, %c0_50] : memref<64x64xf32, #tpu.memory_space<vmem>>, vector<8x64xf32>
    tpu.vector_store %arg6[%c40_49, %c0_50], %269 {strides = array<i32>} : memref<64x64xf32, #tpu.memory_space<vmem>>, vector<8x64xf32>,
    %271 = tpu.concatenate %251, %269 in 1 : vector<8x64xf32>, vector<8x64xf32> -> vector<8x128xf32>
    %cst_51 = arith.constant dense<0.000000e+00> : vector<8x512xf32>
    %272 = tpu.matmul %271, %0, %cst_51 {dimension_numbers = #tpu.dot_dimension_numbers<[1], [0], [0], [1], [0, 0, 1, 1], [], []>} : vector<8x128xf32>, vector<128x512xf32>, vector<8x512xf32> -> vector<8x512xf32>
    %c56 = arith.constant 56 : index
    %c0_52 = arith.constant 0 : index
    %273 = vector.load %arg5[%c56, %c0_52] : memref<64x256xf32, #tpu.memory_space<vmem>>, vector<8x256xf32>
    %274 = vector.extract_strided_slice %272 {offsets = [0, 0], sizes = [8, 256], strides = [1, 1]} : vector<8x512xf32> to vector<8x256xf32>
    %275 = arith.addf %273, %274 : vector<8x256xf32>
    %276 = vector.extract_strided_slice %275 {offsets = [0, 0], sizes = [8, 192], strides = [1, 1]} : vector<8x256xf32> to vector<8x192xf32>
    %277 = arith.negf %276 : vector<8x192xf32>
    %278 = math.exp %277 : vector<8x192xf32>
    %cst_53 = arith.constant 1.000000e+00 : f32
    %279 = vector.broadcast %cst_53 : f32 to vector<8x192xf32>
    %280 = arith.addf %279, %278 : vector<8x192xf32>
    %281 = arith.divf %279, %280 : vector<8x192xf32>
    %282 = vector.extract_strided_slice %275 {offsets = [0, 192], sizes = [8, 64], strides = [1, 1]} : vector<8x256xf32> to vector<8x64xf32>
    %283 = math.tanh %282 : vector<8x64xf32>
    %284 = vector.extract_strided_slice %281 {offsets = [0, 0], sizes = [8, 64], strides = [1, 1]} : vector<8x192xf32> to vector<8x64xf32>
    %285 = vector.extract_strided_slice %281 {offsets = [0, 64], sizes = [8, 64], strides = [1, 1]} : vector<8x192xf32> to vector<8x64xf32>
    %286 = vector.extract_strided_slice %281 {offsets = [0, 128], sizes = [8, 64], strides = [1, 1]} : vector<8x192xf32> to vector<8x64xf32>
    %287 = arith.mulf %285, %249 : vector<8x64xf32>
    %288 = arith.mulf %284, %283 : vector<8x64xf32>
    %289 = arith.addf %287, %288 : vector<8x64xf32>
    %290 = math.tanh %289 : vector<8x64xf32>
    %291 = arith.mulf %286, %290 : vector<8x64xf32>
    %292 = vector.extract_strided_slice %272 {offsets = [0, 256], sizes = [8, 256], strides = [1, 1]} : vector<8x512xf32> to vector<8x256xf32>
    %293 = arith.addf %292, %7 : vector<8x256xf32>
    %294 = vector.extract_strided_slice %293 {offsets = [0, 0], sizes = [8, 192], strides = [1, 1]} : vector<8x256xf32> to vector<8x192xf32>
    %295 = arith.negf %294 : vector<8x192xf32>
    %296 = math.exp %295 : vector<8x192xf32>
    %cst_54 = arith.constant 1.000000e+00 : f32
    %297 = vector.broadcast %cst_54 : f32 to vector<8x192xf32>
    %298 = arith.addf %297, %296 : vector<8x192xf32>
    %299 = arith.divf %297, %298 : vector<8x192xf32>
    %300 = vector.extract_strided_slice %293 {offsets = [0, 192], sizes = [8, 64], strides = [1, 1]} : vector<8x256xf32> to vector<8x64xf32>
    %301 = math.tanh %300 : vector<8x64xf32>
    %302 = vector.extract_strided_slice %299 {offsets = [0, 0], sizes = [8, 64], strides = [1, 1]} : vector<8x192xf32> to vector<8x64xf32>
    %303 = vector.extract_strided_slice %299 {offsets = [0, 64], sizes = [8, 64], strides = [1, 1]} : vector<8x192xf32> to vector<8x64xf32>
    %304 = vector.extract_strided_slice %299 {offsets = [0, 128], sizes = [8, 64], strides = [1, 1]} : vector<8x192xf32> to vector<8x64xf32>
    %305 = arith.mulf %303, %267 : vector<8x64xf32>
    %306 = arith.mulf %302, %301 : vector<8x64xf32>
    %307 = arith.addf %305, %306 : vector<8x64xf32>
    %308 = math.tanh %307 : vector<8x64xf32>
    %309 = arith.mulf %304, %308 : vector<8x64xf32>
    %c48_55 = arith.constant 48 : index
    %c0_56 = arith.constant 0 : index
    %310 = vector.load %arg6[%c48_55, %c0_56] : memref<64x64xf32, #tpu.memory_space<vmem>>, vector<8x64xf32>
    tpu.vector_store %arg6[%c48_55, %c0_56], %309 {strides = array<i32>} : memref<64x64xf32, #tpu.memory_space<vmem>>, vector<8x64xf32>,
    %311 = tpu.concatenate %291, %309 in 1 : vector<8x64xf32>, vector<8x64xf32> -> vector<8x128xf32>
    %cst_57 = arith.constant dense<0.000000e+00> : vector<8x512xf32>
    %312 = tpu.matmul %311, %0, %cst_57 {dimension_numbers = #tpu.dot_dimension_numbers<[1], [0], [0], [1], [0, 0, 1, 1], [], []>} : vector<8x128xf32>, vector<128x512xf32>, vector<8x512xf32> -> vector<8x512xf32>
    %313 = vector.extract_strided_slice %312 {offsets = [0, 256], sizes = [8, 256], strides = [1, 1]} : vector<8x512xf32> to vector<8x256xf32>
    %314 = arith.addf %313, %7 : vector<8x256xf32>
    %315 = vector.extract_strided_slice %314 {offsets = [0, 0], sizes = [8, 192], strides = [1, 1]} : vector<8x256xf32> to vector<8x192xf32>
    %316 = arith.negf %315 : vector<8x192xf32>
    %317 = math.exp %316 : vector<8x192xf32>
    %cst_58 = arith.constant 1.000000e+00 : f32
    %318 = vector.broadcast %cst_58 : f32 to vector<8x192xf32>
    %319 = arith.addf %318, %317 : vector<8x192xf32>
    %320 = arith.divf %318, %319 : vector<8x192xf32>
    %321 = vector.extract_strided_slice %314 {offsets = [0, 192], sizes = [8, 64], strides = [1, 1]} : vector<8x256xf32> to vector<8x64xf32>
    %322 = math.tanh %321 : vector<8x64xf32>
    %323 = vector.extract_strided_slice %320 {offsets = [0, 0], sizes = [8, 64], strides = [1, 1]} : vector<8x192xf32> to vector<8x64xf32>
    %324 = vector.extract_strided_slice %320 {offsets = [0, 64], sizes = [8, 64], strides = [1, 1]} : vector<8x192xf32> to vector<8x64xf32>
    %325 = vector.extract_strided_slice %320 {offsets = [0, 128], sizes = [8, 64], strides = [1, 1]} : vector<8x192xf32> to vector<8x64xf32>
    %326 = arith.mulf %324, %307 : vector<8x64xf32>
    %327 = arith.mulf %323, %322 : vector<8x64xf32>
    %328 = arith.addf %326, %327 : vector<8x64xf32>
    %329 = math.tanh %328 : vector<8x64xf32>
    %330 = arith.mulf %325, %329 : vector<8x64xf32>
    %c56_59 = arith.constant 56 : index
    %c0_60 = arith.constant 0 : index
    %331 = vector.load %arg6[%c56_59, %c0_60] : memref<64x64xf32, #tpu.memory_space<vmem>>, vector<8x64xf32>
    tpu.vector_store %arg6[%c56_59, %c0_60], %330 {strides = array<i32>} : memref<64x64xf32, #tpu.memory_space<vmem>>, vector<8x64xf32>,
    %c0_61 = arith.constant 0 : index
    %c0_62 = arith.constant 0 : index
    %c0_63 = arith.constant 0 : index
    %332 = vector.load %arg3[%c0_61, %c0_62, %c0_63] : memref<2x8x64xf32, #tpu.memory_space<vmem>>, vector<1x8x64xf32>
    %333 = vector.shape_cast %332 : vector<1x8x64xf32> to vector<8x64xf32>
    %334 = vector.shape_cast %291 : vector<8x64xf32> to vector<1x8x64xf32>
    tpu.vector_store %arg3[%c0_61, %c0_62, %c0_63], %334 {strides = array<i32>} : memref<2x8x64xf32, #tpu.memory_space<vmem>>, vector<1x8x64xf32>,
    %c0_64 = arith.constant 0 : index
    %c0_65 = arith.constant 0 : index
    %c0_66 = arith.constant 0 : index
    %335 = vector.load %arg4[%c0_64, %c0_65, %c0_66] : memref<2x8x64xf32, #tpu.memory_space<vmem>>, vector<1x8x64xf32>
    %336 = vector.shape_cast %335 : vector<1x8x64xf32> to vector<8x64xf32>
    %337 = vector.shape_cast %289 : vector<8x64xf32> to vector<1x8x64xf32>
    tpu.vector_store %arg4[%c0_64, %c0_65, %c0_66], %337 {strides = array<i32>} : memref<2x8x64xf32, #tpu.memory_space<vmem>>, vector<1x8x64xf32>,
    %c1 = arith.constant 1 : index
    %c0_67 = arith.constant 0 : index
    %c0_68 = arith.constant 0 : index
    %338 = vector.load %arg3[%c1, %c0_67, %c0_68] : memref<2x8x64xf32, #tpu.memory_space<vmem>>, vector<1x8x64xf32>
    %339 = vector.shape_cast %338 : vector<1x8x64xf32> to vector<8x64xf32>
    %340 = vector.shape_cast %330 : vector<8x64xf32> to vector<1x8x64xf32>
    tpu.vector_store %arg3[%c1, %c0_67, %c0_68], %340 {strides = array<i32>} : memref<2x8x64xf32, #tpu.memory_space<vmem>>, vector<1x8x64xf32>,
    %c1_69 = arith.constant 1 : index
    %c0_70 = arith.constant 0 : index
    %c0_71 = arith.constant 0 : index
    %341 = vector.load %arg4[%c1_69, %c0_70, %c0_71] : memref<2x8x64xf32, #tpu.memory_space<vmem>>, vector<1x8x64xf32>
    %342 = vector.shape_cast %341 : vector<1x8x64xf32> to vector<8x64xf32>
    %343 = vector.shape_cast %328 : vector<8x64xf32> to vector<1x8x64xf32>
    tpu.vector_store %arg4[%c1_69, %c0_70, %c0_71], %343 {strides = array<i32>} : memref<2x8x64xf32, #tpu.memory_space<vmem>>, vector<1x8x64xf32>,
    %c0_72 = arith.constant 0 : index
    %c0_73 = arith.constant 0 : index
    %344 = vector.load %arg6[%c0_72, %c0_73] : memref<64x64xf32, #tpu.memory_space<vmem>>, vector<64x64xf32>
    %cst_74 = arith.constant dense<0.000000e+00> : vector<64x128xf32>
    %345 = tpu.matmul %344, %2, %cst_74 {dimension_numbers = #tpu.dot_dimension_numbers<[1], [0], [0], [1], [0, 0, 1, 1], [], []>} : vector<64x64xf32>, vector<64x128xf32>, vector<64x128xf32> -> vector<64x128xf32>
    %346 = vector.broadcast %5 : vector<1x128xf32> to vector<64x128xf32>
    %347 = arith.addf %345, %346 : vector<64x128xf32>
    %c0_75 = arith.constant 0 : index
    %c0_76 = arith.constant 0 : index
    %348 = vector.load %arg2[%c0_75, %c0_76] : memref<64x128xf32, #tpu.memory_space<vmem>>, vector<64x128xf32>
    tpu.vector_store %arg2[%c0_75, %c0_76], %347 {strides = array<i32>} : memref<64x128xf32, #tpu.memory_space<vmem>>, vector<64x128xf32>,
    return
  }
}

</mosaic_0001>

<llo_original>
// kernel: lstm1_forward.1
$region0: #{lstm1_forward.1}
  #allocation0 [shape = 'u32[]', space=smem, size = 0x4, offset = 0x4, fixed_abs, tag = 'smem constant byte address 0x4 - core index']
  #allocation1 [shape = 'u32[144,128]{1,0:T(1,128)}', space=vmem, size = 0x12000, scoped, tag = 'internal scratch']
  #allocation2 [shape = 'f32[64,256]{1,0:T(8,128)}', space=vmem, size = 0x10000, scoped, tag = 'scratch operand']
  #allocation3 [shape = 'f32[64,64]{1,0:T(8,128)}', space=vmem, size = 0x8000, scoped, tag = 'scratch operand']
  %s0 = inlined_call_operand.vmem [shape: f32[64,128], index: 0, kind: input, shape index: {}]
  %s1 = inlined_call_operand.hbm [shape: f32[328,512], index: 1, kind: input, shape index: {}]
  %s2 = inlined_call_operand.vmem [shape: f32[64,128], index: 2, kind: output, shape index: {0}]
  %s3 = inlined_call_operand.vmem [shape: f32[2,8,64], index: 3, kind: output, shape index: {1}]
  %s4 = inlined_call_operand.vmem [shape: f32[2,8,64], index: 4, kind: output, shape index: {2}]
  %5 = xla_tuple %s2, %s3, %s4
  %s6 = sld [smem:[#allocation0]]
  $region38: #{lstm1_forward.1} parent=0
    _
  %s8 = ssub.s32 1, %s6
  %s9 = scalar_select 0, %s8, %s6
  $region1: #{lstm1_forward.1} parent=0
    #allocation4 [shape = 'u8[671744]{0}', space=vmem, size = 0xa4000, scoped, tag = 'input window, operand 1, single buffered']
    #allocation5 [shape = 's32[1]{0}', space=sflag, size = 0x4, scoped, tag = 'scoped memory for lstm1_forward.1']
    %10 = vsyncpa [#allocation5], 0
    // Predicated region
    $region2: #{lstm1_forward.1} parent=1 // pred_check
      _
    $region3: #{lstm1_forward.1} parent=1 // pred_check_branch
      %12 = sbr.rel (0) target = $region5
    $region4: #{lstm1_forward.1} parent=1 // pred_region
      _
    $region5: #{lstm1_forward.1} parent=1 // pred_fallthru
      _
    // Predicated region
    $region6: #{lstm1_forward.1} parent=1 // pred_check
      _
    $region7: #{lstm1_forward.1} parent=1 // pred_check_branch
      %14 = sbr.rel (0) target = $region9
    $region8: #{lstm1_forward.1} parent=1 // pred_region
      %s16 = ssub.s32 20992, 20992
      %17 = vsyncadd [#allocation5], %s16
      %s18 = sshll.u32 [#allocation4], 4
      %s19 = int_to_ptr.vmem [resolvable:$true] %s18
      %24 = dma.hbm_to_vmem [thread:$0]  %s1, 20992, %s19, [#allocation5], 512, 512, 32
    $region9: #{lstm1_forward.1} parent=1 // pred_fallthru
      _
    // Predicated region
    $region10: #{lstm1_forward.1} parent=1 // pred_check
      _
    $region11: #{lstm1_forward.1} parent=1 // pred_check_branch
      %26 = sbr.rel (0) target = $region13
    $region12: #{lstm1_forward.1} parent=1 // pred_region
      %27 = dma.done [#allocation5], 20992
    $region13: #{lstm1_forward.1} parent=1 // pred_fallthru
      _
    %v28 = vld [vmem:[#allocation4] sm:$0xff]
    %v29 = vld [vmem:[#allocation4 + $0x8] sm:$0xff]
    %v30 = vld [vmem:[#allocation4 + $0x10] sm:$0xff]
    %v31 = vld [vmem:[#allocation4 + $0x18] sm:$0xff]
    %v32 = vld [vmem:[#allocation4 + $0x20] sm:$0xff]
    %v33 = vld [vmem:[#allocation4 + $0x28] sm:$0xff]
    %v34 = vld [vmem:[#allocation4 + $0x30] sm:$0xff]
    %v35 = vld [vmem:[#allocation4 + $0x38] sm:$0xff]
    %v36 = vld [vmem:[#allocation4 + $0x40] sm:$0xff]
    %v37 = vld [vmem:[#allocation4 + $0x48] sm:$0xff]
    %v38 = vld [vmem:[#allocation4 + $0x50] sm:$0xff]
    %v39 = vld [vmem:[#allocation4 + $0x58] sm:$0xff]
    %v40 = vld [vmem:[#allocation4 + $0x60] sm:$0xff]
    %v41 = vld [vmem:[#allocation4 + $0x68] sm:$0xff]
    %v42 = vld [vmem:[#allocation4 + $0x70] sm:$0xff]
    %v43 = vld [vmem:[#allocation4 + $0x78] sm:$0xff]
    %v44 = vld [vmem:[#allocation4 + $0x80] sm:$0xff]
    %v45 = vld [vmem:[#allocation4 + $0x88] sm:$0xff]
    %v46 = vld [vmem:[#allocation4 + $0x90] sm:$0xff]
    %v47 = vld [vmem:[#allocation4 + $0x98] sm:$0xff]
    %v48 = vld [vmem:[#allocation4 + $0xa0] sm:$0xff]
    %v49 = vld [vmem:[#allocation4 + $0xa8] sm:$0xff]
    %v50 = vld [vmem:[#allocation4 + $0xb0] sm:$0xff]
    %v51 = vld [vmem:[#allocation4 + $0xb8] sm:$0xff]
    %v52 = vld [vmem:[#allocation4 + $0xc0] sm:$0xff]
    %v53 = vld [vmem:[#allocation4 + $0xc8] sm:$0xff]
    %v54 = vld [vmem:[#allocation4 + $0xd0] sm:$0xff]
    %v55 = vld [vmem:[#allocation4 + $0xd8] sm:$0xff]
    %v56 = vld [vmem:[#allocation4 + $0xe0] sm:$0xff]
    %v57 = vld [vmem:[#allocation4 + $0xe8] sm:$0xff]
    %v58 = vld [vmem:[#allocation4 + $0xf0] sm:$0xff]
    %v59 = vld [vmem:[#allocation4 + $0xf8] sm:$0xff]
    %v60 = vld [vmem:[#allocation4 + $0x100] sm:$0xff]
    %v61 = vld [vmem:[#allocation4 + $0x108] sm:$0xff]
    %v62 = vld [vmem:[#allocation4 + $0x110] sm:$0xff]
    %v63 = vld [vmem:[#allocation4 + $0x118] sm:$0xff]
    %v64 = vld [vmem:[#allocation4 + $0x120] sm:$0xff]
    %v65 = vld [vmem:[#allocation4 + $0x128] sm:$0xff]
    %v66 = vld [vmem:[#allocation4 + $0x130] sm:$0xff]
    %v67 = vld [vmem:[#allocation4 + $0x138] sm:$0xff]
    %v68 = vld [vmem:[#allocation4 + $0x140] sm:$0xff]
    %v69 = vld [vmem:[#allocation4 + $0x148] sm:$0xff]
    %v70 = vld [vmem:[#allocation4 + $0x150] sm:$0xff]
    %v71 = vld [vmem:[#allocation4 + $0x158] sm:$0xff]
    %v72 = vld [vmem:[#allocation4 + $0x160] sm:$0xff]
    %v73 = vld [vmem:[#allocation4 + $0x168] sm:$0xff]
    %v74 = vld [vmem:[#allocation4 + $0x170] sm:$0xff]
    %v75 = vld [vmem:[#allocation4 + $0x178] sm:$0xff]
    %v76 = vld [vmem:[#allocation4 + $0x180] sm:$0xff]
    %v77 = vld [vmem:[#allocation4 + $0x188] sm:$0xff]
    %v78 = vld [vmem:[#allocation4 + $0x190] sm:$0xff]
    %v79 = vld [vmem:[#allocation4 + $0x198] sm:$0xff]
    %v80 = vld [vmem:[#allocation4 + $0x1a0] sm:$0xff]
    %v81 = vld [vmem:[#allocation4 + $0x1a8] sm:$0xff]
    %v82 = vld [vmem:[#allocation4 + $0x1b0] sm:$0xff]
    %v83 = vld [vmem:[#allocation4 + $0x1b8] sm:$0xff]
    %v84 = vld [vmem:[#allocation4 + $0x1c0] sm:$0xff]
    %v85 = vld [vmem:[#allocation4 + $0x1c8] sm:$0xff]
    %v86 = vld [vmem:[#allocation4 + $0x1d0] sm:$0xff]
    %v87 = vld [vmem:[#allocation4 + $0x1d8] sm:$0xff]
    %v88 = vld [vmem:[#allocation4 + $0x1e0] sm:$0xff]
    %v89 = vld [vmem:[#allocation4 + $0x1e8] sm:$0xff]
    %v90 = vld [vmem:[#allocation4 + $0x1f0] sm:$0xff]
    %v91 = vld [vmem:[#allocation4 + $0x1f8] sm:$0xff]
    %v92 = vld [vmem:[#allocation4 + $0x200] sm:$0xff]
    %v93 = vld [vmem:[#allocation4 + $0x208] sm:$0xff]
    %v94 = vld [vmem:[#allocation4 + $0x220] sm:$0xff]
    %v95 = vld [vmem:[#allocation4 + $0x228] sm:$0xff]
    %v96 = vld [vmem:[#allocation4 + $0x240] sm:$0xff]
    %v97 = vld [vmem:[#allocation4 + $0x248] sm:$0xff]
    %v98 = vld [vmem:[#allocation4 + $0x260] sm:$0xff]
    %v99 = vld [vmem:[#allocation4 + $0x268] sm:$0xff]
    %v100 = vld [vmem:[#allocation4 + $0x280] sm:$0xff]
    %v101 = vld [vmem:[#allocation4 + $0x288] sm:$0xff]
    %v102 = vld [vmem:[#allocation4 + $0x2a0] sm:$0xff]
    %v103 = vld [vmem:[#allocation4 + $0x2a8] sm:$0xff]
    %v104 = vld [vmem:[#allocation4 + $0x2c0] sm:$0xff]
    %v105 = vld [vmem:[#allocation4 + $0x2c8] sm:$0xff]
    %v106 = vld [vmem:[#allocation4 + $0x2e0] sm:$0xff]
    %v107 = vld [vmem:[#allocation4 + $0x2e8] sm:$0xff]
    %v108 = vld [vmem:[#allocation4 + $0x300] sm:$0xff]
    %v109 = vld [vmem:[#allocation4 + $0x308] sm:$0xff]
    %v110 = vld [vmem:[#allocation4 + $0x320] sm:$0xff]
    %v111 = vld [vmem:[#allocation4 + $0x328] sm:$0xff]
    %v112 = vld [vmem:[#allocation4 + $0x340] sm:$0xff]
    %v113 = vld [vmem:[#allocation4 + $0x348] sm:$0xff]
    %v114 = vld [vmem:[#allocation4 + $0x360] sm:$0xff]
    %v115 = vld [vmem:[#allocation4 + $0x368] sm:$0xff]
    %v116 = vld [vmem:[#allocation4 + $0x380] sm:$0xff]
    %v117 = vld [vmem:[#allocation4 + $0x388] sm:$0xff]
    %v118 = vld [vmem:[#allocation4 + $0x3a0] sm:$0xff]
    %v119 = vld [vmem:[#allocation4 + $0x3a8] sm:$0xff]
    %v120 = vld [vmem:[#allocation4 + $0x3c0] sm:$0xff]
    %v121 = vld [vmem:[#allocation4 + $0x3c8] sm:$0xff]
    %v122 = vld [vmem:[#allocation4 + $0x3e0] sm:$0xff]
    %v123 = vld [vmem:[#allocation4 + $0x3e8] sm:$0xff]
    %v124 = vld [vmem:[#allocation4 + $0x400] sm:$0xff]
    %v125 = vld [vmem:[#allocation4 + $0x420] sm:$0xff]
    %v126 = vld [vmem:[#allocation4 + $0x440] sm:$0xff]
    %v127 = vld [vmem:[#allocation4 + $0x460] sm:$0xff]
    %v128 = vld [vmem:[#allocation4 + $0x480] sm:$0xff]
    %v129 = vld [vmem:[#allocation4 + $0x4a0] sm:$0xff]
    %v130 = vld [vmem:[#allocation4 + $0x4c0] sm:$0xff]
    %v131 = vld [vmem:[#allocation4 + $0x4e0] sm:$0xff]
    %s132 = scalar_lea.vmem [#allocation4], 1280
    %v133 = vld [vmem:[%s132] ss:$8 sm:$0x3]
    %s134 = scalar_lea.vmem [#allocation4], 1296
    %v135 = vld [vmem:[%s134] ss:$8 sm:$0x3]
    %v136 = vld [vmem:[#allocation4 + $0x501] ss:$0 sm:$0xff]
    %v138 = vlaneseq
    %v139 = vshrl.u32 %v138, 7
    %v140 = vsub.s32 0, %v139
    %v141 = vrot.slane %v135, %v140
    %v142 = vlaneseq
    %v143 = vshrl.u32 %v142, 7
    %v144 = vsub.s32 1, %v143
    %v145 = vrot.slane %v135, %v144
    %v148 = vld [vmem:[%s0] sm:$0xff]
    %v149 = vld [vmem:[%s0 + $0x8] sm:$0xff]
    %v150 = vld [vmem:[%s0 + $0x10] sm:$0xff]
    %v151 = vld [vmem:[%s0 + $0x18] sm:$0xff]
    %v152 = vld [vmem:[%s0 + $0x20] sm:$0xff]
    %v153 = vld [vmem:[%s0 + $0x28] sm:$0xff]
    %v154 = vld [vmem:[%s0 + $0x30] sm:$0xff]
    %v155 = vld [vmem:[%s0 + $0x38] sm:$0xff]
    %v157 = vlaneseq
    %v158 = vshrl.u32 %v157, 7
    %v159 = vsub.s32 0, %v158
    %v160 = vrot.slane %v133, %v159
    %v161 = vlaneseq
    %v162 = vshrl.u32 %v161, 7
    %v163 = vsub.s32 1, %v162
    %v164 = vrot.slane %v133, %v163
    %167 = vmatprep.subr.mxu0 %v93
    %168 = vmatpush1.msra.mxu0 %v92
    %169 = vmatprep.subr.mxu0 %v95
    %170 = vmatpush1.msra.mxu0 %v94
    %171 = vmatprep.subr.mxu0 %v97
    %172 = vmatpush1.msra.mxu0 %v96
    %173 = vmatprep.subr.mxu0 %v99
    %174 = vmatpush1.msra.mxu0 %v98
    %175 = vmatprep.subr.mxu0 %v101
    %176 = vmatpush1.msra.mxu0 %v100
    %177 = vmatprep.subr.mxu0 %v103
    %178 = vmatpush1.msra.mxu0 %v102
    %179 = vmatprep.subr.mxu0 %v105
    %180 = vmatpush1.msra.mxu0 %v104
    %181 = vmatprep.subr.mxu0 %v107
    %182 = vmatpush1.msra.mxu0 %v106
    %183 = vmatprep.subr.mxu0 %v109
    %184 = vmatpush1.msra.mxu0 %v108
    %185 = vmatprep.subr.mxu0 %v111
    %186 = vmatpush1.msra.mxu0 %v110
    %187 = vmatprep.subr.mxu0 %v113
    %188 = vmatpush1.msra.mxu0 %v112
    %189 = vmatprep.subr.mxu0 %v115
    %190 = vmatpush1.msra.mxu0 %v114
    %191 = vmatprep.subr.mxu0 %v117
    %192 = vmatpush1.msra.mxu0 %v116
    %193 = vmatprep.subr.mxu0 %v119
    %194 = vmatpush1.msra.mxu0 %v118
    %195 = vmatprep.subr.mxu0 %v121
    %196 = vmatpush1.msra.mxu0 %v120
    %197 = vmatprep.subr.mxu0 %v123
    %198 = vmatpush1.msra.mxu0 %v122
    %199 = vmatprep.subr.mxu0 0.0
    %200 = vmatpush1.msra.mxu0 0.0
    %201 = vmatprep.subr.mxu0 0.0
    %202 = vmatpush1.msra.mxu0 0.0
    %203 = vmatprep.subr.mxu0 0.0
    %204 = vmatpush1.msra.mxu0 0.0
    %205 = vmatprep.subr.mxu0 0.0
    %206 = vmatpush1.msra.mxu0 0.0
    %207 = vmatprep.subr.mxu0 0.0
    %208 = vmatpush1.msra.mxu0 0.0
    %209 = vmatprep.subr.mxu0 0.0
    %210 = vmatpush1.msra.mxu0 0.0
    %211 = vmatprep.subr.mxu0 0.0
    %212 = vmatpush1.msra.mxu0 0.0
    %213 = vmatprep.subr.mxu0 0.0
    %214 = vmatpush1.msra.mxu0 0.0
    %215 = vmatprep.subr.mxu0 0.0
    %216 = vmatpush1.msra.mxu0 0.0
    %217 = vmatprep.subr.mxu0 0.0
    %218 = vmatpush1.msra.mxu0 0.0
    %219 = vmatprep.subr.mxu0 0.0
    %220 = vmatpush1.msra.mxu0 0.0
    %221 = vmatprep.subr.mxu0 0.0
    %222 = vmatpush1.msra.mxu0 0.0
    %223 = vmatprep.subr.mxu0 0.0
    %224 = vmatpush1.msra.mxu0 0.0
    %225 = vmatprep.subr.mxu0 0.0
    %226 = vmatpush1.msra.mxu0 0.0
    %227 = vmatprep.subr.mxu0 0.0
    %228 = vmatpush1.msra.mxu0 0.0
    %229 = vmatprep.subr.mxu0 0.0
    %230 = vmatpush1.msra.mxu0 0.0
    %231 = vmatprep.mubr.f32.mxu0 0.0
    %232 = vmatmul.mubr.f32.gmra.mrb[0].mxu0 %v148
    %v233 = vpop.f32.mrb[0].mxu0
    %v234 = vadd.f32 %v160, %v233
    %v235 = vpop.f32.mrb[0].mxu0
    %v236 = vadd.f32 %v164, %v235
    %237 = vmatprep.mubr.f32.mxu0 0.0
    %238 = vmatmul.mubr.f32.gmra.mrb[0].mxu0 %v149
    %v239 = vpop.f32.mrb[0].mxu0
    %v240 = vadd.f32 %v160, %v239
    %v241 = vpop.f32.mrb[0].mxu0
    %v242 = vadd.f32 %v164, %v241
    %243 = vmatprep.mubr.f32.mxu0 0.0
    %244 = vmatmul.mubr.f32.gmra.mrb[0].mxu0 %v150
    %v245 = vpop.f32.mrb[0].mxu0
    %v246 = vadd.f32 %v160, %v245
    %v247 = vpop.f32.mrb[0].mxu0
    %v248 = vadd.f32 %v164, %v247
    %249 = vmatprep.mubr.f32.mxu0 0.0
    %250 = vmatmul.mubr.f32.gmra.mrb[0].mxu0 %v151
    %v251 = vpop.f32.mrb[0].mxu0
    %v252 = vadd.f32 %v160, %v251
    %v253 = vpop.f32.mrb[0].mxu0
    %v254 = vadd.f32 %v164, %v253
    %255 = vmatprep.mubr.f32.mxu0 0.0
    %256 = vmatmul.mubr.f32.gmra.mrb[0].mxu0 %v152
    %v257 = vpop.f32.mrb[0].mxu0
    %v258 = vadd.f32 %v160, %v257
    %v259 = vpop.f32.mrb[0].mxu0
    %v260 = vadd.f32 %v164, %v259
    %261 = vmatprep.mubr.f32.mxu0 0.0
    %262 = vmatmul.mubr.f32.gmra.mrb[0].mxu0 %v153
    %v263 = vpop.f32.mrb[0].mxu0
    %v264 = vadd.f32 %v160, %v263
    %v265 = vpop.f32.mrb[0].mxu0
    %v266 = vadd.f32 %v164, %v265
    %267 = vmatprep.mubr.f32.mxu0 0.0
    %268 = vmatmul.mubr.f32.gmra.mrb[0].mxu0 %v154
    %v269 = vpop.f32.mrb[0].mxu0
    %v270 = vadd.f32 %v160, %v269
    %v271 = vpop.f32.mrb[0].mxu0
    %v272 = vadd.f32 %v164, %v271
    %273 = vmatprep.mubr.f32.mxu0 0.0
    %274 = vmatmul.mubr.f32.gmra.mrb[0].mxu0 %v155
    %v275 = vpop.f32.mrb[0].mxu0
    %v276 = vadd.f32 %v160, %v275
    %v277 = vpop.f32.mrb[0].mxu0
    %v278 = vadd.f32 %v164, %v277
    %279 = vdwg.mxu0
    %280 = vst [vmem:[#allocation2] sm:$0xff] %v234
    %281 = vst [vmem:[#allocation2 + $0x8] sm:$0xff] %v236
    %282 = vst [vmem:[#allocation2 + $0x10] sm:$0xff] %v240
    %283 = vst [vmem:[#allocation2 + $0x18] sm:$0xff] %v242
    %284 = vst [vmem:[#allocation2 + $0x20] sm:$0xff] %v246
    %285 = vst [vmem:[#allocation2 + $0x28] sm:$0xff] %v248
    %286 = vst [vmem:[#allocation2 + $0x30] sm:$0xff] %v252
    %287 = vst [vmem:[#allocation2 + $0x38] sm:$0xff] %v254
    %288 = vst [vmem:[#allocation2 + $0x40] sm:$0xff] %v258
    %289 = vst [vmem:[#allocation2 + $0x48] sm:$0xff] %v260
    %290 = vst [vmem:[#allocation2 + $0x50] sm:$0xff] %v264
    %291 = vst [vmem:[#allocation2 + $0x58] sm:$0xff] %v266
    %292 = vst [vmem:[#allocation2 + $0x60] sm:$0xff] %v270
    %293 = vst [vmem:[#allocation2 + $0x68] sm:$0xff] %v272
    %294 = vst [vmem:[#allocation2 + $0x70] sm:$0xff] %v276
    %295 = vst [vmem:[#allocation2 + $0x78] sm:$0xff] %v278
    %v296 = vld [vmem:[#allocation2] sm:$0xff]
    %v297 = vld [vmem:[#allocation2 + $0x8] sm:$0xff]
    %v298 = vxor.u32 %v296, 2147483648
    %v299 = vxor.u32 %v297, 2147483648
    %v300 = vmul.f32 %v298, 1.442695
    %v301 = vpow.pop %v300
    %v302 = vmul.f32 %v299, 1.442695
    %v303 = vpow.pop %v302
    %v304 = vadd.f32 %v301, 1.0
    %v305 = vadd.f32 %v303, 1.0
    %v306 = vrcp.pop %v304
    %v307 = vmul.f32 1.0, %v306
    %v308 = vrcp.pop %v305
    %v309 = vmul.f32 1.0, %v308
    %v310 = vtanh.pop %v297
    %v311 = vmul.f32 %v307, 0.0
    %313 = vrot.lane.b32.xlu0 %v310, 64
    %v314 = vpop.permute.xlu0 %313
    %v316 = vmul.f32 %v307, %v314
    %318 = vrot.lane.b32.xlu0 %v316, 64
    %v319 = vpop.permute.xlu0 %318
    %v321 = vadd.f32 %v311, %v319
    %v322 = vtanh.pop %v321
    %324 = vrot.lane.b32.xlu0 %v322, 64
    %v325 = vpop.permute.xlu0 %324
    %v327 = vmul.f32 %v309, %v325
    %vm328 = vcmask 523264
    %v329 = vsel %vm328, %v327, 0.0
    %330 = vmatprep.subr.mxu0 %v29
    %331 = vmatpush1.msra.mxu0 %v28
    %332 = vmatprep.subr.mxu0 %v33
    %333 = vmatpush1.msra.mxu0 %v32
    %334 = vmatprep.subr.mxu0 %v37
    %335 = vmatpush1.msra.mxu0 %v36
    %336 = vmatprep.subr.mxu0 %v41
    %337 = vmatpush1.msra.mxu0 %v40
    %338 = vmatprep.subr.mxu0 %v45
    %339 = vmatpush1.msra.mxu0 %v44
    %340 = vmatprep.subr.mxu0 %v49
    %341 = vmatpush1.msra.mxu0 %v48
    %342 = vmatprep.subr.mxu0 %v53
    %343 = vmatpush1.msra.mxu0 %v52
    %344 = vmatprep.subr.mxu0 %v57
    %345 = vmatpush1.msra.mxu0 %v56
    %346 = vmatprep.subr.mxu0 %v61
    %347 = vmatpush1.msra.mxu0 %v60
    %348 = vmatprep.subr.mxu0 %v65
    %349 = vmatpush1.msra.mxu0 %v64
    %350 = vmatprep.subr.mxu0 %v69
    %351 = vmatpush1.msra.mxu0 %v68
    %352 = vmatprep.subr.mxu0 %v73
    %353 = vmatpush1.msra.mxu0 %v72
    %354 = vmatprep.subr.mxu0 %v77
    %355 = vmatpush1.msra.mxu0 %v76
    %356 = vmatprep.subr.mxu0 %v81
    %357 = vmatpush1.msra.mxu0 %v80
    %358 = vmatprep.subr.mxu0 %v85
    %359 = vmatpush1.msra.mxu0 %v84
    %360 = vmatprep.subr.mxu0 %v89
    %361 = vmatpush1.msra.mxu0 %v88
    %362 = vmatprep.subr.mxu0 0.0
    %363 = vmatpush1.msra.mxu0 0.0
    %364 = vmatprep.subr.mxu0 0.0
    %365 = vmatpush1.msra.mxu0 0.0
    %366 = vmatprep.subr.mxu0 0.0
    %367 = vmatpush1.msra.mxu0 0.0
    %368 = vmatprep.subr.mxu0 0.0
    %369 = vmatpush1.msra.mxu0 0.0
    %370 = vmatprep.subr.mxu0 0.0
    %371 = vmatpush1.msra.mxu0 0.0
    %372 = vmatprep.subr.mxu0 0.0
    %373 = vmatpush1.msra.mxu0 0.0
    %374 = vmatprep.subr.mxu0 0.0
    %375 = vmatpush1.msra.mxu0 0.0
    %376 = vmatprep.subr.mxu0 0.0
    %377 = vmatpush1.msra.mxu0 0.0
    %378 = vmatprep.subr.mxu0 0.0
    %379 = vmatpush1.msra.mxu0 0.0
    %380 = vmatprep.subr.mxu0 0.0
    %381 = vmatpush1.msra.mxu0 0.0
    %382 = vmatprep.subr.mxu0 0.0
    %383 = vmatpush1.msra.mxu0 0.0
    %384 = vmatprep.subr.mxu0 0.0
    %385 = vmatpush1.msra.mxu0 0.0
    %386 = vmatprep.subr.mxu0 0.0
    %387 = vmatpush1.msra.mxu0 0.0
    %388 = vmatprep.subr.mxu0 0.0
    %389 = vmatpush1.msra.mxu0 0.0
    %390 = vmatprep.subr.mxu0 0.0
    %391 = vmatpush1.msra.mxu0 0.0
    %392 = vmatprep.subr.mxu0 0.0
    %393 = vmatpush1.msra.mxu0 0.0
    %394 = vmatprep.mubr.f32.mxu0 0.0
    %395 = vmatmul.mubr.f32.gmra.mrb[0].mxu0 %v329
    %v396 = vpop.f32.mrb[0].mxu0
    %v397 = vadd.f32 0.0, %v396
    %v398 = vpop.f32.mrb[0].mxu0
    %v399 = vadd.f32 0.0, %v398
    %400 = vdwg.mxu0
    %401 = vmatprep.subr.mxu0 %v31
    %402 = vmatpush1.msra.mxu0 %v30
    %403 = vmatprep.subr.mxu0 %v35
    %404 = vmatpush1.msra.mxu0 %v34
    %405 = vmatprep.subr.mxu0 %v39
    %406 = vmatpush1.msra.mxu0 %v38
    %407 = vmatprep.subr.mxu0 %v43
    %408 = vmatpush1.msra.mxu0 %v42
    %409 = vmatprep.subr.mxu0 %v47
    %410 = vmatpush1.msra.mxu0 %v46
    %411 = vmatprep.subr.mxu0 %v51
    %412 = vmatpush1.msra.mxu0 %v50
    %413 = vmatprep.subr.mxu0 %v55
    %414 = vmatpush1.msra.mxu0 %v54
    %415 = vmatprep.subr.mxu0 %v59
    %416 = vmatpush1.msra.mxu0 %v58
    %417 = vmatprep.subr.mxu0 %v63
    %418 = vmatpush1.msra.mxu0 %v62
    %419 = vmatprep.subr.mxu0 %v67
    %420 = vmatpush1.msra.mxu0 %v66
    %421 = vmatprep.subr.mxu0 %v71
    %422 = vmatpush1.msra.mxu0 %v70
    %423 = vmatprep.subr.mxu0 %v75
    %424 = vmatpush1.msra.mxu0 %v74
    %425 = vmatprep.subr.mxu0 %v79
    %426 = vmatpush1.msra.mxu0 %v78
    %427 = vmatprep.subr.mxu0 %v83
    %428 = vmatpush1.msra.mxu0 %v82
    %429 = vmatprep.subr.mxu0 %v87
    %430 = vmatpush1.msra.mxu0 %v86
    %431 = vmatprep.subr.mxu0 %v91
    %432 = vmatpush1.msra.mxu0 %v90
    %433 = vmatprep.subr.mxu0 0.0
    %434 = vmatpush1.msra.mxu0 0.0
    %435 = vmatprep.subr.mxu0 0.0
    %436 = vmatpush1.msra.mxu0 0.0
    %437 = vmatprep.subr.mxu0 0.0
    %438 = vmatpush1.msra.mxu0 0.0
    %439 = vmatprep.subr.mxu0 0.0
    %440 = vmatpush1.msra.mxu0 0.0
    %441 = vmatprep.subr.mxu0 0.0
    %442 = vmatpush1.msra.mxu0 0.0
    %443 = vmatprep.subr.mxu0 0.0
    %444 = vmatpush1.msra.mxu0 0.0
    %445 = vmatprep.subr.mxu0 0.0
    %446 = vmatpush1.msra.mxu0 0.0
    %447 = vmatprep.subr.mxu0 0.0
    %448 = vmatpush1.msra.mxu0 0.0
    %449 = vmatprep.subr.mxu0 0.0
    %450 = vmatpush1.msra.mxu0 0.0
    %451 = vmatprep.subr.mxu0 0.0
    %452 = vmatpush1.msra.mxu0 0.0
    %453 = vmatprep.subr.mxu0 0.0
    %454 = vmatpush1.msra.mxu0 0.0
    %455 = vmatprep.subr.mxu0 0.0
    %456 = vmatpush1.msra.mxu0 0.0
    %457 = vmatprep.subr.mxu0 0.0
    %458 = vmatpush1.msra.mxu0 0.0
    %459 = vmatprep.subr.mxu0 0.0
    %460 = vmatpush1.msra.mxu0 0.0
    %461 = vmatprep.subr.mxu0 0.0
    %462 = vmatpush1.msra.mxu0 0.0
    %463 = vmatprep.subr.mxu0 0.0
    %464 = vmatpush1.msra.mxu0 0.0
    %465 = vmatprep.mubr.f32.mxu0 0.0
    %466 = vmatmul.mubr.f32.gmra.mrb[0].mxu0 %v329
    %v467 = vpop.f32.mrb[0].mxu0
    %v468 = vadd.f32 0.0, %v467
    %v469 = vpop.f32.mrb[0].mxu0
    %v470 = vadd.f32 0.0, %v469
    %471 = vdwg.mxu0
    %v472 = vld [vmem:[#allocation2 + $0x10] sm:$0xff]
    %v473 = vld [vmem:[#allocation2 + $0x18] sm:$0xff]
    %v474 = vadd.f32 %v472, %v397
    %v475 = vadd.f32 %v473, %v399
    %v476 = vxor.u32 %v474, 2147483648
    %v477 = vxor.u32 %v475, 2147483648
    %v478 = vmul.f32 %v476, 1.442695
    %v479 = vpow.pop %v478
    %v480 = vmul.f32 %v477, 1.442695
    %v481 = vpow.pop %v480
    %v482 = vadd.f32 %v479, 1.0
    %v483 = vadd.f32 %v481, 1.0
    %v484 = vrcp.pop %v482
    %v485 = vmul.f32 1.0, %v484
    %v486 = vrcp.pop %v483
    %v487 = vmul.f32 1.0, %v486
    %v488 = vtanh.pop %v475
    %v489 = vmul.f32 %v485, %v321
    %491 = vrot.lane.b32.xlu0 %v488, 64
    %v492 = vpop.permute.xlu0 %491
    %v494 = vmul.f32 %v485, %v492
    %496 = vrot.lane.b32.xlu0 %v494, 64
    %v497 = vpop.permute.xlu0 %496
    %v499 = vadd.f32 %v489, %v497
    %v500 = vtanh.pop %v499
    %502 = vrot.lane.b32.xlu0 %v500, 64
    %v503 = vpop.permute.xlu0 %502
    %v505 = vmul.f32 %v487, %v503
    %v506 = vadd.f32 %v468, %v141
    %v507 = vadd.f32 %v470, %v145
    %v508 = vxor.u32 %v506, 2147483648
    %v509 = vxor.u32 %v507, 2147483648
    %v510 = vmul.f32 %v508, 1.442695
    %v511 = vpow.pop %v510
    %v512 = vmul.f32 %v509, 1.442695
    %v513 = vpow.pop %v512
    %v514 = vadd.f32 %v511, 1.0
    %v515 = vadd.f32 %v513, 1.0
    %v516 = vrcp.pop %v514
    %v517 = vmul.f32 1.0, %v516
    %v518 = vrcp.pop %v515
    %v519 = vmul.f32 1.0, %v518
    %v520 = vtanh.pop %v507
    %v521 = vmul.f32 %v517, 0.0
    %523 = vrot.lane.b32.xlu0 %v520, 64
    %v524 = vpop.permute.xlu0 %523
    %v526 = vmul.f32 %v517, %v524
    %528 = vrot.lane.b32.xlu0 %v526, 64
    %v529 = vpop.permute.xlu0 %528
    %v531 = vadd.f32 %v521, %v529
    %v532 = vtanh.pop %v531
    %534 = vrot.lane.b32.xlu0 %v532, 64
    %v535 = vpop.permute.xlu0 %534
    %v537 = vmul.f32 %v519, %v535
    %538 = vst.msk [vmem:[#allocation3] sm:$0xff] %vm328, %v537
    %540 = vrot.lane.b32.xlu0 %v537, 64
    %v541 = vpop.permute.xlu0 %540
    %v543 = vsel %vm328, %v505, %v541
    %544 = vmatprep.subr.mxu0 %v29
    %545 = vmatpush1.msra.mxu0 %v28
    %546 = vmatprep.subr.mxu0 %v33
    %547 = vmatpush1.msra.mxu0 %v32
    %548 = vmatprep.subr.mxu0 %v37
    %549 = vmatpush1.msra.mxu0 %v36
    %550 = vmatprep.subr.mxu0 %v41
    %551 = vmatpush1.msra.mxu0 %v40
    %552 = vmatprep.subr.mxu0 %v45
    %553 = vmatpush1.msra.mxu0 %v44
    %554 = vmatprep.subr.mxu0 %v49
    %555 = vmatpush1.msra.mxu0 %v48
    %556 = vmatprep.subr.mxu0 %v53
    %557 = vmatpush1.msra.mxu0 %v52
    %558 = vmatprep.subr.mxu0 %v57
    %559 = vmatpush1.msra.mxu0 %v56
    %560 = vmatprep.subr.mxu0 %v61
    %561 = vmatpush1.msra.mxu0 %v60
    %562 = vmatprep.subr.mxu0 %v65
    %563 = vmatpush1.msra.mxu0 %v64
    %564 = vmatprep.subr.mxu0 %v69
    %565 = vmatpush1.msra.mxu0 %v68
    %566 = vmatprep.subr.mxu0 %v73
    %567 = vmatpush1.msra.mxu0 %v72
    %568 = vmatprep.subr.mxu0 %v77
    %569 = vmatpush1.msra.mxu0 %v76
    %570 = vmatprep.subr.mxu0 %v81
    %571 = vmatpush1.msra.mxu0 %v80
    %572 = vmatprep.subr.mxu0 %v85
    %573 = vmatpush1.msra.mxu0 %v84
    %574 = vmatprep.subr.mxu0 %v89
    %575 = vmatpush1.msra.mxu0 %v88
    %576 = vmatprep.subr.mxu0 0.0
    %577 = vmatpush1.msra.mxu0 0.0
    %578 = vmatprep.subr.mxu0 0.0
    %579 = vmatpush1.msra.mxu0 0.0
    %580 = vmatprep.subr.mxu0 0.0
    %581 = vmatpush1.msra.mxu0 0.0
    %582 = vmatprep.subr.mxu0 0.0
    %583 = vmatpush1.msra.mxu0 0.0
    %584 = vmatprep.subr.mxu0 0.0
    %585 = vmatpush1.msra.mxu0 0.0
    %586 = vmatprep.subr.mxu0 0.0
    %587 = vmatpush1.msra.mxu0 0.0
    %588 = vmatprep.subr.mxu0 0.0
    %589 = vmatpush1.msra.mxu0 0.0
    %590 = vmatprep.subr.mxu0 0.0
    %591 = vmatpush1.msra.mxu0 0.0
    %592 = vmatprep.subr.mxu0 0.0
    %593 = vmatpush1.msra.mxu0 0.0
    %594 = vmatprep.subr.mxu0 0.0
    %595 = vmatpush1.msra.mxu0 0.0
    %596 = vmatprep.subr.mxu0 0.0
    %597 = vmatpush1.msra.mxu0 0.0
    %598 = vmatprep.subr.mxu0 0.0
    %599 = vmatpush1.msra.mxu0 0.0
    %600 = vmatprep.subr.mxu0 0.0
    %601 = vmatpush1.msra.mxu0 0.0
    %602 = vmatprep.subr.mxu0 0.0
    %603 = vmatpush1.msra.mxu0 0.0
    %604 = vmatprep.subr.mxu0 0.0
    %605 = vmatpush1.msra.mxu0 0.0
    %606 = vmatprep.subr.mxu0 0.0
    %607 = vmatpush1.msra.mxu0 0.0
    %608 = vmatprep.mubr.f32.mxu0 0.0
    %609 = vmatmul.mubr.f32.gmra.mrb[0].mxu0 %v543
    %v610 = vpop.f32.mrb[0].mxu0
    %v611 = vadd.f32 0.0, %v610
    %v612 = vpop.f32.mrb[0].mxu0
    %v613 = vadd.f32 0.0, %v612
    %614 = vdwg.mxu0
    %615 = vmatprep.subr.mxu0 %v31
    %616 = vmatpush1.msra.mxu0 %v30
    %617 = vmatprep.subr.mxu0 %v35
    %618 = vmatpush1.msra.mxu0 %v34
    %619 = vmatprep.subr.mxu0 %v39
    %620 = vmatpush1.msra.mxu0 %v38
    %621 = vmatprep.subr.mxu0 %v43
    %622 = vmatpush1.msra.mxu0 %v42
    %623 = vmatprep.subr.mxu0 %v47
    %624 = vmatpush1.msra.mxu0 %v46
    %625 = vmatprep.subr.mxu0 %v51
    %626 = vmatpush1.msra.mxu0 %v50
    %627 = vmatprep.subr.mxu0 %v55
    %628 = vmatpush1.msra.mxu0 %v54
    %629 = vmatprep.subr.mxu0 %v59
    %630 = vmatpush1.msra.mxu0 %v58
    %631 = vmatprep.subr.mxu0 %v63
    %632 = vmatpush1.msra.mxu0 %v62
    %633 = vmatprep.subr.mxu0 %v67
    %634 = vmatpush1.msra.mxu0 %v66
    %635 = vmatprep.subr.mxu0 %v71
    %636 = vmatpush1.msra.mxu0 %v70
    %637 = vmatprep.subr.mxu0 %v75
    %638 = vmatpush1.msra.mxu0 %v74
    %639 = vmatprep.subr.mxu0 %v79
    %640 = vmatpush1.msra.mxu0 %v78
    %641 = vmatprep.subr.mxu0 %v83
    %642 = vmatpush1.msra.mxu0 %v82
    %643 = vmatprep.subr.mxu0 %v87
    %644 = vmatpush1.msra.mxu0 %v86
    %645 = vmatprep.subr.mxu0 %v91
    %646 = vmatpush1.msra.mxu0 %v90
    %647 = vmatprep.subr.mxu0 0.0
    %648 = vmatpush1.msra.mxu0 0.0
    %649 = vmatprep.subr.mxu0 0.0
    %650 = vmatpush1.msra.mxu0 0.0
    %651 = vmatprep.subr.mxu0 0.0
    %652 = vmatpush1.msra.mxu0 0.0
    %653 = vmatprep.subr.mxu0 0.0
    %654 = vmatpush1.msra.mxu0 0.0
    %655 = vmatprep.subr.mxu0 0.0
    %656 = vmatpush1.msra.mxu0 0.0
    %657 = vmatprep.subr.mxu0 0.0
    %658 = vmatpush1.msra.mxu0 0.0
    %659 = vmatprep.subr.mxu0 0.0
    %660 = vmatpush1.msra.mxu0 0.0
    %661 = vmatprep.subr.mxu0 0.0
    %662 = vmatpush1.msra.mxu0 0.0
    %663 = vmatprep.subr.mxu0 0.0
    %664 = vmatpush1.msra.mxu0 0.0
    %665 = vmatprep.subr.mxu0 0.0
    %666 = vmatpush1.msra.mxu0 0.0
    %667 = vmatprep.subr.mxu0 0.0
    %668 = vmatpush1.msra.mxu0 0.0
    %669 = vmatprep.subr.mxu0 0.0
    %670 = vmatpush1.msra.mxu0 0.0
    %671 = vmatprep.subr.mxu0 0.0
    %672 = vmatpush1.msra.mxu0 0.0
    %673 = vmatprep.subr.mxu0 0.0
    %674 = vmatpush1.msra.mxu0 0.0
    %675 = vmatprep.subr.mxu0 0.0
    %676 = vmatpush1.msra.mxu0 0.0
    %677 = vmatprep.subr.mxu0 0.0
    %678 = vmatpush1.msra.mxu0 0.0
    %679 = vmatprep.mubr.f32.mxu0 0.0
    %680 = vmatmul.mubr.f32.gmra.mrb[0].mxu0 %v543
    %v681 = vpop.f32.mrb[0].mxu0
    %v682 = vadd.f32 0.0, %v681
    %v683 = vpop.f32.mrb[0].mxu0
    %v684 = vadd.f32 0.0, %v683
    %685 = vdwg.mxu0
    %v686 = vld [vmem:[#allocation2 + $0x20] sm:$0xff]
    %v687 = vld [vmem:[#allocation2 + $0x28] sm:$0xff]
    %v688 = vadd.f32 %v686, %v611
    %v689 = vadd.f32 %v687, %v613
    %v690 = vxor.u32 %v688, 2147483648
    %v691 = vxor.u32 %v689, 2147483648
    %v692 = vmul.f32 %v690, 1.442695
    %v693 = vpow.pop %v692
    %v694 = vmul.f32 %v691, 1.442695
    %v695 = vpow.pop %v694
    %v696 = vadd.f32 %v693, 1.0
    %v697 = vadd.f32 %v695, 1.0
    %v698 = vrcp.pop %v696
    %v699 = vmul.f32 1.0, %v698
    %v700 = vrcp.pop %v697
    %v701 = vmul.f32 1.0, %v700
    %v702 = vtanh.pop %v689
    %v703 = vmul.f32 %v699, %v499
    %705 = vrot.lane.b32.xlu0 %v702, 64
    %v706 = vpop.permute.xlu0 %705
    %v708 = vmul.f32 %v699, %v706
    %710 = vrot.lane.b32.xlu0 %v708, 64
    %v711 = vpop.permute.xlu0 %710
    %v713 = vadd.f32 %v703, %v711
    %v714 = vtanh.pop %v713
    %716 = vrot.lane.b32.xlu0 %v714, 64
    %v717 = vpop.permute.xlu0 %716
    %v719 = vmul.f32 %v701, %v717
    %v720 = vadd.f32 %v682, %v141
    %v721 = vadd.f32 %v684, %v145
    %v722 = vxor.u32 %v720, 2147483648
    %v723 = vxor.u32 %v721, 2147483648
    %v724 = vmul.f32 %v722, 1.442695
    %v725 = vpow.pop %v724
    %v726 = vmul.f32 %v723, 1.442695
    %v727 = vpow.pop %v726
    %v728 = vadd.f32 %v725, 1.0
    %v729 = vadd.f32 %v727, 1.0
    %v730 = vrcp.pop %v728
    %v731 = vmul.f32 1.0, %v730
    %v732 = vrcp.pop %v729
    %v733 = vmul.f32 1.0, %v732
    %v734 = vtanh.pop %v721
    %v735 = vmul.f32 %v731, %v531
    %737 = vrot.lane.b32.xlu0 %v734, 64
    %v738 = vpop.permute.xlu0 %737
    %v740 = vmul.f32 %v731, %v738
    %742 = vrot.lane.b32.xlu0 %v740, 64
    %v743 = vpop.permute.xlu0 %742
    %v745 = vadd.f32 %v735, %v743
    %v746 = vtanh.pop %v745
    %748 = vrot.lane.b32.xlu0 %v746, 64
    %v749 = vpop.permute.xlu0 %748
    %v751 = vmul.f32 %v733, %v749
    %752 = vst.msk [vmem:[#allocation3 + $0x8] sm:$0xff] %vm328, %v751
    %754 = vrot.lane.b32.xlu0 %v751, 64
    %v755 = vpop.permute.xlu0 %754
    %v757 = vsel %vm328, %v719, %v755
    %758 = vmatprep.subr.mxu0 %v29
    %759 = vmatpush1.msra.mxu0 %v28
    %760 = vmatprep.subr.mxu0 %v33
    %761 = vmatpush1.msra.mxu0 %v32
    %762 = vmatprep.subr.mxu0 %v37
    %763 = vmatpush1.msra.mxu0 %v36
    %764 = vmatprep.subr.mxu0 %v41
    %765 = vmatpush1.msra.mxu0 %v40
    %766 = vmatprep.subr.mxu0 %v45
    %767 = vmatpush1.msra.mxu0 %v44
    %768 = vmatprep.subr.mxu0 %v49
    %769 = vmatpush1.msra.mxu0 %v48
    %770 = vmatprep.subr.mxu0 %v53
    %771 = vmatpush1.msra.mxu0 %v52
    %772 = vmatprep.subr.mxu0 %v57
    %773 = vmatpush1.msra.mxu0 %v56
    %774 = vmatprep.subr.mxu0 %v61
    %775 = vmatpush1.msra.mxu0 %v60
    %776 = vmatprep.subr.mxu0 %v65
    %777 = vmatpush1.msra.mxu0 %v64
    %778 = vmatprep.subr.mxu0 %v69
    %779 = vmatpush1.msra.mxu0 %v68
    %780 = vmatprep.subr.mxu0 %v73
    %781 = vmatpush1.msra.mxu0 %v72
    %782 = vmatprep.subr.mxu0 %v77
    %783 = vmatpush1.msra.mxu0 %v76
    %784 = vmatprep.subr.mxu0 %v81
    %785 = vmatpush1.msra.mxu0 %v80
    %786 = vmatprep.subr.mxu0 %v85
    %787 = vmatpush1.msra.mxu0 %v84
    %788 = vmatprep.subr.mxu0 %v89
    %789 = vmatpush1.msra.mxu0 %v88
    %790 = vmatprep.subr.mxu0 0.0
    %791 = vmatpush1.msra.mxu0 0.0
    %792 = vmatprep.subr.mxu0 0.0
    %793 = vmatpush1.msra.mxu0 0.0
    %794 = vmatprep.subr.mxu0 0.0
    %795 = vmatpush1.msra.mxu0 0.0
    %796 = vmatprep.subr.mxu0 0.0
    %797 = vmatpush1.msra.mxu0 0.0
    %798 = vmatprep.subr.mxu0 0.0
    %799 = vmatpush1.msra.mxu0 0.0
    %800 = vmatprep.subr.mxu0 0.0
    %801 = vmatpush1.msra.mxu0 0.0
    %802 = vmatprep.subr.mxu0 0.0
    %803 = vmatpush1.msra.mxu0 0.0
    %804 = vmatprep.subr.mxu0 0.0
    %805 = vmatpush1.msra.mxu0 0.0
    %806 = vmatprep.subr.mxu0 0.0
    %807 = vmatpush1.msra.mxu0 0.0
    %808 = vmatprep.subr.mxu0 0.0
    %809 = vmatpush1.msra.mxu0 0.0
    %810 = vmatprep.subr.mxu0 0.0
    %811 = vmatpush1.msra.mxu0 0.0
    %812 = vmatprep.subr.mxu0 0.0
    %813 = vmatpush1.msra.mxu0 0.0
    %814 = vmatprep.subr.mxu0 0.0
    %815 = vmatpush1.msra.mxu0 0.0
    %816 = vmatprep.subr.mxu0 0.0
    %817 = vmatpush1.msra.mxu0 0.0
    %818 = vmatprep.subr.mxu0 0.0
    %819 = vmatpush1.msra.mxu0 0.0
    %820 = vmatprep.subr.mxu0 0.0
    %821 = vmatpush1.msra.mxu0 0.0
    %822 = vmatprep.mubr.f32.mxu0 0.0
    %823 = vmatmul.mubr.f32.gmra.mrb[0].mxu0 %v757
    %v824 = vpop.f32.mrb[0].mxu0
    %v825 = vadd.f32 0.0, %v824
    %v826 = vpop.f32.mrb[0].mxu0
    %v827 = vadd.f32 0.0, %v826
    %828 = vdwg.mxu0
    %829 = vmatprep.subr.mxu0 %v31
    %830 = vmatpush1.msra.mxu0 %v30
    %831 = vmatprep.subr.mxu0 %v35
    %832 = vmatpush1.msra.mxu0 %v34
    %833 = vmatprep.subr.mxu0 %v39
    %834 = vmatpush1.msra.mxu0 %v38
    %835 = vmatprep.subr.mxu0 %v43
    %836 = vmatpush1.msra.mxu0 %v42
    %837 = vmatprep.subr.mxu0 %v47
    %838 = vmatpush1.msra.mxu0 %v46
    %839 = vmatprep.subr.mxu0 %v51
    %840 = vmatpush1.msra.mxu0 %v50
    %841 = vmatprep.subr.mxu0 %v55
    %842 = vmatpush1.msra.mxu0 %v54
    %843 = vmatprep.subr.mxu0 %v59
    %844 = vmatpush1.msra.mxu0 %v58
    %845 = vmatprep.subr.mxu0 %v63
    %846 = vmatpush1.msra.mxu0 %v62
    %847 = vmatprep.subr.mxu0 %v67
    %848 = vmatpush1.msra.mxu0 %v66
    %849 = vmatprep.subr.mxu0 %v71
    %850 = vmatpush1.msra.mxu0 %v70
    %851 = vmatprep.subr.mxu0 %v75
    %852 = vmatpush1.msra.mxu0 %v74
    %853 = vmatprep.subr.mxu0 %v79
    %854 = vmatpush1.msra.mxu0 %v78
    %855 = vmatprep.subr.mxu0 %v83
    %856 = vmatpush1.msra.mxu0 %v82
    %857 = vmatprep.subr.mxu0 %v87
    %858 = vmatpush1.msra.mxu0 %v86
    %859 = vmatprep.subr.mxu0 %v91
    %860 = vmatpush1.msra.mxu0 %v90
    %861 = vmatprep.subr.mxu0 0.0
    %862 = vmatpush1.msra.mxu0 0.0
    %863 = vmatprep.subr.mxu0 0.0
    %864 = vmatpush1.msra.mxu0 0.0
    %865 = vmatprep.subr.mxu0 0.0
    %866 = vmatpush1.msra.mxu0 0.0
    %867 = vmatprep.subr.mxu0 0.0
    %868 = vmatpush1.msra.mxu0 0.0
    %869 = vmatprep.subr.mxu0 0.0
    %870 = vmatpush1.msra.mxu0 0.0
    %871 = vmatprep.subr.mxu0 0.0
    %872 = vmatpush1.msra.mxu0 0.0
    %873 = vmatprep.subr.mxu0 0.0
    %874 = vmatpush1.msra.mxu0 0.0
    %875 = vmatprep.subr.mxu0 0.0
    %876 = vmatpush1.msra.mxu0 0.0
    %877 = vmatprep.subr.mxu0 0.0
    %878 = vmatpush1.msra.mxu0 0.0
    %879 = vmatprep.subr.mxu0 0.0
    %880 = vmatpush1.msra.mxu0 0.0
    %881 = vmatprep.subr.mxu0 0.0
    %882 = vmatpush1.msra.mxu0 0.0
    %883 = vmatprep.subr.mxu0 0.0
    %884 = vmatpush1.msra.mxu0 0.0
    %885 = vmatprep.subr.mxu0 0.0
    %886 = vmatpush1.msra.mxu0 0.0
    %887 = vmatprep.subr.mxu0 0.0
    %888 = vmatpush1.msra.mxu0 0.0
    %889 = vmatprep.subr.mxu0 0.0
    %890 = vmatpush1.msra.mxu0 0.0
    %891 = vmatprep.subr.mxu0 0.0
    %892 = vmatpush1.msra.mxu0 0.0
    %893 = vmatprep.mubr.f32.mxu0 0.0
    %894 = vmatmul.mubr.f32.gmra.mrb[0].mxu0 %v757
    %v895 = vpop.f32.mrb[0].mxu0
    %v896 = vadd.f32 0.0, %v895
    %v897 = vpop.f32.mrb[0].mxu0
    %v898 = vadd.f32 0.0, %v897
    %899 = vdwg.mxu0
    %v900 = vld [vmem:[#allocation2 + $0x30] sm:$0xff]
    %v901 = vld [vmem:[#allocation2 + $0x38] sm:$0xff]
    %v902 = vadd.f32 %v900, %v825
    %v903 = vadd.f32 %v901, %v827
    %v904 = vxor.u32 %v902, 2147483648
    %v905 = vxor.u32 %v903, 2147483648
    %v906 = vmul.f32 %v904, 1.442695
    %v907 = vpow.pop %v906
    %v908 = vmul.f32 %v905, 1.442695
    %v909 = vpow.pop %v908
    %v910 = vadd.f32 %v907, 1.0
    %v911 = vadd.f32 %v909, 1.0
    %v912 = vrcp.pop %v910
    %v913 = vmul.f32 1.0, %v912
    %v914 = vrcp.pop %v911
    %v915 = vmul.f32 1.0, %v914
    %v916 = vtanh.pop %v903
    %v917 = vmul.f32 %v913, %v713
    %919 = vrot.lane.b32.xlu0 %v916, 64
    %v920 = vpop.permute.xlu0 %919
    %v922 = vmul.f32 %v913, %v920
    %924 = vrot.lane.b32.xlu0 %v922, 64
    %v925 = vpop.permute.xlu0 %924
    %v927 = vadd.f32 %v917, %v925
    %v928 = vtanh.pop %v927
    %930 = vrot.lane.b32.xlu0 %v928, 64
    %v931 = vpop.permute.xlu0 %930
    %v933 = vmul.f32 %v915, %v931
    %v934 = vadd.f32 %v896, %v141
    %v935 = vadd.f32 %v898, %v145
    %v936 = vxor.u32 %v934, 2147483648
    %v937 = vxor.u32 %v935, 2147483648
    %v938 = vmul.f32 %v936, 1.442695
    %v939 = vpow.pop %v938
    %v940 = vmul.f32 %v937, 1.442695
    %v941 = vpow.pop %v940
    %v942 = vadd.f32 %v939, 1.0
    %v943 = vadd.f32 %v941, 1.0
    %v944 = vrcp.pop %v942
    %v945 = vmul.f32 1.0, %v944
    %v946 = vrcp.pop %v943
    %v947 = vmul.f32 1.0, %v946
    %v948 = vtanh.pop %v935
    %v949 = vmul.f32 %v945, %v745
    %951 = vrot.lane.b32.xlu0 %v948, 64
    %v952 = vpop.permute.xlu0 %951
    %v954 = vmul.f32 %v945, %v952
    %956 = vrot.lane.b32.xlu0 %v954, 64
    %v957 = vpop.permute.xlu0 %956
    %v959 = vadd.f32 %v949, %v957
    %v960 = vtanh.pop %v959
    %962 = vrot.lane.b32.xlu0 %v960, 64
    %v963 = vpop.permute.xlu0 %962
    %v965 = vmul.f32 %v947, %v963
    %966 = vst.msk [vmem:[#allocation3 + $0x10] sm:$0xff] %vm328, %v965
    %968 = vrot.lane.b32.xlu0 %v965, 64
    %v969 = vpop.permute.xlu0 %968
    %v971 = vsel %vm328, %v933, %v969
    %972 = vmatprep.subr.mxu0 %v29
    %973 = vmatpush1.msra.mxu0 %v28
    %974 = vmatprep.subr.mxu0 %v33
    %975 = vmatpush1.msra.mxu0 %v32
    %976 = vmatprep.subr.mxu0 %v37
    %977 = vmatpush1.msra.mxu0 %v36
    %978 = vmatprep.subr.mxu0 %v41
    %979 = vmatpush1.msra.mxu0 %v40
    %980 = vmatprep.subr.mxu0 %v45
    %981 = vmatpush1.msra.mxu0 %v44
    %982 = vmatprep.subr.mxu0 %v49
    %983 = vmatpush1.msra.mxu0 %v48
    %984 = vmatprep.subr.mxu0 %v53
    %985 = vmatpush1.msra.mxu0 %v52
    %986 = vmatprep.subr.mxu0 %v57
    %987 = vmatpush1.msra.mxu0 %v56
    %988 = vmatprep.subr.mxu0 %v61
    %989 = vmatpush1.msra.mxu0 %v60
    %990 = vmatprep.subr.mxu0 %v65
    %991 = vmatpush1.msra.mxu0 %v64
    %992 = vmatprep.subr.mxu0 %v69
    %993 = vmatpush1.msra.mxu0 %v68
    %994 = vmatprep.subr.mxu0 %v73
    %995 = vmatpush1.msra.mxu0 %v72
    %996 = vmatprep.subr.mxu0 %v77
    %997 = vmatpush1.msra.mxu0 %v76
    %998 = vmatprep.subr.mxu0 %v81
    %999 = vmatpush1.msra.mxu0 %v80
    %1000 = vmatprep.subr.mxu0 %v85
    %1001 = vmatpush1.msra.mxu0 %v84
    %1002 = vmatprep.subr.mxu0 %v89
    %1003 = vmatpush1.msra.mxu0 %v88
    %1004 = vmatprep.subr.mxu0 0.0
    %1005 = vmatpush1.msra.mxu0 0.0
    %1006 = vmatprep.subr.mxu0 0.0
    %1007 = vmatpush1.msra.mxu0 0.0
    %1008 = vmatprep.subr.mxu0 0.0
    %1009 = vmatpush1.msra.mxu0 0.0
    %1010 = vmatprep.subr.mxu0 0.0
    %1011 = vmatpush1.msra.mxu0 0.0
    %1012 = vmatprep.subr.mxu0 0.0
    %1013 = vmatpush1.msra.mxu0 0.0
    %1014 = vmatprep.subr.mxu0 0.0
    %1015 = vmatpush1.msra.mxu0 0.0
    %1016 = vmatprep.subr.mxu0 0.0
    %1017 = vmatpush1.msra.mxu0 0.0
    %1018 = vmatprep.subr.mxu0 0.0
    %1019 = vmatpush1.msra.mxu0 0.0
    %1020 = vmatprep.subr.mxu0 0.0
    %1021 = vmatpush1.msra.mxu0 0.0
    %1022 = vmatprep.subr.mxu0 0.0
    %1023 = vmatpush1.msra.mxu0 0.0
    %1024 = vmatprep.subr.mxu0 0.0
    %1025 = vmatpush1.msra.mxu0 0.0
    %1026 = vmatprep.subr.mxu0 0.0
    %1027 = vmatpush1.msra.mxu0 0.0
    %1028 = vmatprep.subr.mxu0 0.0
    %1029 = vmatpush1.msra.mxu0 0.0
    %1030 = vmatprep.subr.mxu0 0.0
    %1031 = vmatpush1.msra.mxu0 0.0
    %1032 = vmatprep.subr.mxu0 0.0
    %1033 = vmatpush1.msra.mxu0 0.0
    %1034 = vmatprep.subr.mxu0 0.0
    %1035 = vmatpush1.msra.mxu0 0.0
    %1036 = vmatprep.mubr.f32.mxu0 0.0
    %1037 = vmatmul.mubr.f32.gmra.mrb[0].mxu0 %v971
    %v1038 = vpop.f32.mrb[0].mxu0
    %v1039 = vadd.f32 0.0, %v1038
    %v1040 = vpop.f32.mrb[0].mxu0
    %v1041 = vadd.f32 0.0, %v1040
    %1042 = vdwg.mxu0
    %1043 = vmatprep.subr.mxu0 %v31
    %1044 = vmatpush1.msra.mxu0 %v30
    %1045 = vmatprep.subr.mxu0 %v35
    %1046 = vmatpush1.msra.mxu0 %v34
    %1047 = vmatprep.subr.mxu0 %v39
    %1048 = vmatpush1.msra.mxu0 %v38
    %1049 = vmatprep.subr.mxu0 %v43
    %1050 = vmatpush1.msra.mxu0 %v42
    %1051 = vmatprep.subr.mxu0 %v47
    %1052 = vmatpush1.msra.mxu0 %v46
    %1053 = vmatprep.subr.mxu0 %v51
    %1054 = vmatpush1.msra.mxu0 %v50
    %1055 = vmatprep.subr.mxu0 %v55
    %1056 = vmatpush1.msra.mxu0 %v54
    %1057 = vmatprep.subr.mxu0 %v59
    %1058 = vmatpush1.msra.mxu0 %v58
    %1059 = vmatprep.subr.mxu0 %v63
    %1060 = vmatpush1.msra.mxu0 %v62
    %1061 = vmatprep.subr.mxu0 %v67
    %1062 = vmatpush1.msra.mxu0 %v66
    %1063 = vmatprep.subr.mxu0 %v71
    %1064 = vmatpush1.msra.mxu0 %v70
    %1065 = vmatprep.subr.mxu0 %v75
    %1066 = vmatpush1.msra.mxu0 %v74
    %1067 = vmatprep.subr.mxu0 %v79
    %1068 = vmatpush1.msra.mxu0 %v78
    %1069 = vmatprep.subr.mxu0 %v83
    %1070 = vmatpush1.msra.mxu0 %v82
    %1071 = vmatprep.subr.mxu0 %v87
    %1072 = vmatpush1.msra.mxu0 %v86
    %1073 = vmatprep.subr.mxu0 %v91
    %1074 = vmatpush1.msra.mxu0 %v90
    %1075 = vmatprep.subr.mxu0 0.0
    %1076 = vmatpush1.msra.mxu0 0.0
    %1077 = vmatprep.subr.mxu0 0.0
    %1078 = vmatpush1.msra.mxu0 0.0
    %1079 = vmatprep.subr.mxu0 0.0
    %1080 = vmatpush1.msra.mxu0 0.0
    %1081 = vmatprep.subr.mxu0 0.0
    %1082 = vmatpush1.msra.mxu0 0.0
    %1083 = vmatprep.subr.mxu0 0.0
    %1084 = vmatpush1.msra.mxu0 0.0
    %1085 = vmatprep.subr.mxu0 0.0
    %1086 = vmatpush1.msra.mxu0 0.0
    %1087 = vmatprep.subr.mxu0 0.0
    %1088 = vmatpush1.msra.mxu0 0.0
    %1089 = vmatprep.subr.mxu0 0.0
    %1090 = vmatpush1.msra.mxu0 0.0
    %1091 = vmatprep.subr.mxu0 0.0
    %1092 = vmatpush1.msra.mxu0 0.0
    %1093 = vmatprep.subr.mxu0 0.0
    %1094 = vmatpush1.msra.mxu0 0.0
    %1095 = vmatprep.subr.mxu0 0.0
    %1096 = vmatpush1.msra.mxu0 0.0
    %1097 = vmatprep.subr.mxu0 0.0
    %1098 = vmatpush1.msra.mxu0 0.0
    %1099 = vmatprep.subr.mxu0 0.0
    %1100 = vmatpush1.msra.mxu0 0.0
    %1101 = vmatprep.subr.mxu0 0.0
    %1102 = vmatpush1.msra.mxu0 0.0
    %1103 = vmatprep.subr.mxu0 0.0
    %1104 = vmatpush1.msra.mxu0 0.0
    %1105 = vmatprep.subr.mxu0 0.0
    %1106 = vmatpush1.msra.mxu0 0.0
    %1107 = vmatprep.mubr.f32.mxu0 0.0
    %1108 = vmatmul.mubr.f32.gmra.mrb[0].mxu0 %v971
    %v1109 = vpop.f32.mrb[0].mxu0
    %v1110 = vadd.f32 0.0, %v1109
    %v1111 = vpop.f32.mrb[0].mxu0
    %v1112 = vadd.f32 0.0, %v1111
    %1113 = vdwg.mxu0
    %v1114 = vld [vmem:[#allocation2 + $0x40] sm:$0xff]
    %v1115 = vld [vmem:[#allocation2 + $0x48] sm:$0xff]
    %v1116 = vadd.f32 %v1114, %v1039
    %v1117 = vadd.f32 %v1115, %v1041
    %v1118 = vxor.u32 %v1116, 2147483648
    %v1119 = vxor.u32 %v1117, 2147483648
    %v1120 = vmul.f32 %v1118, 1.442695
    %v1121 = vpow.pop %v1120
    %v1122 = vmul.f32 %v1119, 1.442695
    %v1123 = vpow.pop %v1122
    %v1124 = vadd.f32 %v1121, 1.0
    %v1125 = vadd.f32 %v1123, 1.0
    %v1126 = vrcp.pop %v1124
    %v1127 = vmul.f32 1.0, %v1126
    %v1128 = vrcp.pop %v1125
    %v1129 = vmul.f32 1.0, %v1128
    %v1130 = vtanh.pop %v1117
    %v1131 = vmul.f32 %v1127, %v927
    %1133 = vrot.lane.b32.xlu0 %v1130, 64
    %v1134 = vpop.permute.xlu0 %1133
    %v1136 = vmul.f32 %v1127, %v1134
    %1138 = vrot.lane.b32.xlu0 %v1136, 64
    %v1139 = vpop.permute.xlu0 %1138
    %v1141 = vadd.f32 %v1131, %v1139
    %v1142 = vtanh.pop %v1141
    %1144 = vrot.lane.b32.xlu0 %v1142, 64
    %v1145 = vpop.permute.xlu0 %1144
    %v1147 = vmul.f32 %v1129, %v1145
    %v1148 = vadd.f32 %v1110, %v141
    %v1149 = vadd.f32 %v1112, %v145
    %v1150 = vxor.u32 %v1148, 2147483648
    %v1151 = vxor.u32 %v1149, 2147483648
    %v1152 = vmul.f32 %v1150, 1.442695
    %v1153 = vpow.pop %v1152
    %v1154 = vmul.f32 %v1151, 1.442695
    %v1155 = vpow.pop %v1154
    %v1156 = vadd.f32 %v1153, 1.0
    %v1157 = vadd.f32 %v1155, 1.0
    %v1158 = vrcp.pop %v1156
    %v1159 = vmul.f32 1.0, %v1158
    %v1160 = vrcp.pop %v1157
    %v1161 = vmul.f32 1.0, %v1160
    %v1162 = vtanh.pop %v1149
    %v1163 = vmul.f32 %v1159, %v959
    %1165 = vrot.lane.b32.xlu0 %v1162, 64
    %v1166 = vpop.permute.xlu0 %1165
    %v1168 = vmul.f32 %v1159, %v1166
    %1170 = vrot.lane.b32.xlu0 %v1168, 64
    %v1171 = vpop.permute.xlu0 %1170
    %v1173 = vadd.f32 %v1163, %v1171
    %v1174 = vtanh.pop %v1173
    %1176 = vrot.lane.b32.xlu0 %v1174, 64
    %v1177 = vpop.permute.xlu0 %1176
    %v1179 = vmul.f32 %v1161, %v1177
    %1180 = vst.msk [vmem:[#allocation3 + $0x18] sm:$0xff] %vm328, %v1179
    %1182 = vrot.lane.b32.xlu0 %v1179, 64
    %v1183 = vpop.permute.xlu0 %1182
    %v1185 = vsel %vm328, %v1147, %v1183
    %1186 = vmatprep.subr.mxu0 %v29
    %1187 = vmatpush1.msra.mxu0 %v28
    %1188 = vmatprep.subr.mxu0 %v33
    %1189 = vmatpush1.msra.mxu0 %v32
    %1190 = vmatprep.subr.mxu0 %v37
    %1191 = vmatpush1.msra.mxu0 %v36
    %1192 = vmatprep.subr.mxu0 %v41
    %1193 = vmatpush1.msra.mxu0 %v40
    %1194 = vmatprep.subr.mxu0 %v45
    %1195 = vmatpush1.msra.mxu0 %v44
    %1196 = vmatprep.subr.mxu0 %v49
    %1197 = vmatpush1.msra.mxu0 %v48
    %1198 = vmatprep.subr.mxu0 %v53
    %1199 = vmatpush1.msra.mxu0 %v52
    %1200 = vmatprep.subr.mxu0 %v57
    %1201 = vmatpush1.msra.mxu0 %v56
    %1202 = vmatprep.subr.mxu0 %v61
    %1203 = vmatpush1.msra.mxu0 %v60
    %1204 = vmatprep.subr.mxu0 %v65
    %1205 = vmatpush1.msra.mxu0 %v64
    %1206 = vmatprep.subr.mxu0 %v69
    %1207 = vmatpush1.msra.mxu0 %v68
    %1208 = vmatprep.subr.mxu0 %v73
    %1209 = vmatpush1.msra.mxu0 %v72
    %1210 = vmatprep.subr.mxu0 %v77
    %1211 = vmatpush1.msra.mxu0 %v76
    %1212 = vmatprep.subr.mxu0 %v81
    %1213 = vmatpush1.msra.mxu0 %v80
    %1214 = vmatprep.subr.mxu0 %v85
    %1215 = vmatpush1.msra.mxu0 %v84
    %1216 = vmatprep.subr.mxu0 %v89
    %1217 = vmatpush1.msra.mxu0 %v88
    %1218 = vmatprep.subr.mxu0 0.0
    %1219 = vmatpush1.msra.mxu0 0.0
    %1220 = vmatprep.subr.mxu0 0.0
    %1221 = vmatpush1.msra.mxu0 0.0
    %1222 = vmatprep.subr.mxu0 0.0
    %1223 = vmatpush1.msra.mxu0 0.0
    %1224 = vmatprep.subr.mxu0 0.0
    %1225 = vmatpush1.msra.mxu0 0.0
    %1226 = vmatprep.subr.mxu0 0.0
    %1227 = vmatpush1.msra.mxu0 0.0
    %1228 = vmatprep.subr.mxu0 0.0
    %1229 = vmatpush1.msra.mxu0 0.0
    %1230 = vmatprep.subr.mxu0 0.0
    %1231 = vmatpush1.msra.mxu0 0.0
    %1232 = vmatprep.subr.mxu0 0.0
    %1233 = vmatpush1.msra.mxu0 0.0
    %1234 = vmatprep.subr.mxu0 0.0
    %1235 = vmatpush1.msra.mxu0 0.0
    %1236 = vmatprep.subr.mxu0 0.0
    %1237 = vmatpush1.msra.mxu0 0.0
    %1238 = vmatprep.subr.mxu0 0.0
    %1239 = vmatpush1.msra.mxu0 0.0
    %1240 = vmatprep.subr.mxu0 0.0
    %1241 = vmatpush1.msra.mxu0 0.0
    %1242 = vmatprep.subr.mxu0 0.0
    %1243 = vmatpush1.msra.mxu0 0.0
    %1244 = vmatprep.subr.mxu0 0.0
    %1245 = vmatpush1.msra.mxu0 0.0
    %1246 = vmatprep.subr.mxu0 0.0
    %1247 = vmatpush1.msra.mxu0 0.0
    %1248 = vmatprep.subr.mxu0 0.0
    %1249 = vmatpush1.msra.mxu0 0.0
    %1250 = vmatprep.mubr.f32.mxu0 0.0
    %1251 = vmatmul.mubr.f32.gmra.mrb[0].mxu0 %v1185
    %v1252 = vpop.f32.mrb[0].mxu0
    %v1253 = vadd.f32 0.0, %v1252
    %v1254 = vpop.f32.mrb[0].mxu0
    %v1255 = vadd.f32 0.0, %v1254
    %1256 = vdwg.mxu0
    %1257 = vmatprep.subr.mxu0 %v31
    %1258 = vmatpush1.msra.mxu0 %v30
    %1259 = vmatprep.subr.mxu0 %v35
    %1260 = vmatpush1.msra.mxu0 %v34
    %1261 = vmatprep.subr.mxu0 %v39
    %1262 = vmatpush1.msra.mxu0 %v38
    %1263 = vmatprep.subr.mxu0 %v43
    %1264 = vmatpush1.msra.mxu0 %v42
    %1265 = vmatprep.subr.mxu0 %v47
    %1266 = vmatpush1.msra.mxu0 %v46
    %1267 = vmatprep.subr.mxu0 %v51
    %1268 = vmatpush1.msra.mxu0 %v50
    %1269 = vmatprep.subr.mxu0 %v55
    %1270 = vmatpush1.msra.mxu0 %v54
    %1271 = vmatprep.subr.mxu0 %v59
    %1272 = vmatpush1.msra.mxu0 %v58
    %1273 = vmatprep.subr.mxu0 %v63
    %1274 = vmatpush1.msra.mxu0 %v62
    %1275 = vmatprep.subr.mxu0 %v67
    %1276 = vmatpush1.msra.mxu0 %v66
    %1277 = vmatprep.subr.mxu0 %v71
    %1278 = vmatpush1.msra.mxu0 %v70
    %1279 = vmatprep.subr.mxu0 %v75
    %1280 = vmatpush1.msra.mxu0 %v74
    %1281 = vmatprep.subr.mxu0 %v79
    %1282 = vmatpush1.msra.mxu0 %v78
    %1283 = vmatprep.subr.mxu0 %v83
    %1284 = vmatpush1.msra.mxu0 %v82
    %1285 = vmatprep.subr.mxu0 %v87
    %1286 = vmatpush1.msra.mxu0 %v86
    %1287 = vmatprep.subr.mxu0 %v91
    %1288 = vmatpush1.msra.mxu0 %v90
    %1289 = vmatprep.subr.mxu0 0.0
    %1290 = vmatpush1.msra.mxu0 0.0
    %1291 = vmatprep.subr.mxu0 0.0
    %1292 = vmatpush1.msra.mxu0 0.0
    %1293 = vmatprep.subr.mxu0 0.0
    %1294 = vmatpush1.msra.mxu0 0.0
    %1295 = vmatprep.subr.mxu0 0.0
    %1296 = vmatpush1.msra.mxu0 0.0
    %1297 = vmatprep.subr.mxu0 0.0
    %1298 = vmatpush1.msra.mxu0 0.0
    %1299 = vmatprep.subr.mxu0 0.0
    %1300 = vmatpush1.msra.mxu0 0.0
    %1301 = vmatprep.subr.mxu0 0.0
    %1302 = vmatpush1.msra.mxu0 0.0
    %1303 = vmatprep.subr.mxu0 0.0
    %1304 = vmatpush1.msra.mxu0 0.0
    %1305 = vmatprep.subr.mxu0 0.0
    %1306 = vmatpush1.msra.mxu0 0.0
    %1307 = vmatprep.subr.mxu0 0.0
    %1308 = vmatpush1.msra.mxu0 0.0
    %1309 = vmatprep.subr.mxu0 0.0
    %1310 = vmatpush1.msra.mxu0 0.0
    %1311 = vmatprep.subr.mxu0 0.0
    %1312 = vmatpush1.msra.mxu0 0.0
    %1313 = vmatprep.subr.mxu0 0.0
    %1314 = vmatpush1.msra.mxu0 0.0
    %1315 = vmatprep.subr.mxu0 0.0
    %1316 = vmatpush1.msra.mxu0 0.0
    %1317 = vmatprep.subr.mxu0 0.0
    %1318 = vmatpush1.msra.mxu0 0.0
    %1319 = vmatprep.subr.mxu0 0.0
    %1320 = vmatpush1.msra.mxu0 0.0
    %1321 = vmatprep.mubr.f32.mxu0 0.0
    %1322 = vmatmul.mubr.f32.gmra.mrb[0].mxu0 %v1185
    %v1323 = vpop.f32.mrb[0].mxu0
    %v1324 = vadd.f32 0.0, %v1323
    %v1325 = vpop.f32.mrb[0].mxu0
    %v1326 = vadd.f32 0.0, %v1325
    %1327 = vdwg.mxu0
    %v1328 = vld [vmem:[#allocation2 + $0x50] sm:$0xff]
    %v1329 = vld [vmem:[#allocation2 + $0x58] sm:$0xff]
    %v1330 = vadd.f32 %v1328, %v1253
    %v1331 = vadd.f32 %v1329, %v1255
    %v1332 = vxor.u32 %v1330, 2147483648
    %v1333 = vxor.u32 %v1331, 2147483648
    %v1334 = vmul.f32 %v1332, 1.442695
    %v1335 = vpow.pop %v1334
    %v1336 = vmul.f32 %v1333, 1.442695
    %v1337 = vpow.pop %v1336
    %v1338 = vadd.f32 %v1335, 1.0
    %v1339 = vadd.f32 %v1337, 1.0
    %v1340 = vrcp.pop %v1338
    %v1341 = vmul.f32 1.0, %v1340
    %v1342 = vrcp.pop %v1339
    %v1343 = vmul.f32 1.0, %v1342
    %v1344 = vtanh.pop %v1331
    %v1345 = vmul.f32 %v1341, %v1141
    %1347 = vrot.lane.b32.xlu0 %v1344, 64
    %v1348 = vpop.permute.xlu0 %1347
    %v1350 = vmul.f32 %v1341, %v1348
    %1352 = vrot.lane.b32.xlu0 %v1350, 64
    %v1353 = vpop.permute.xlu0 %1352
    %v1355 = vadd.f32 %v1345, %v1353
    %v1356 = vtanh.pop %v1355
    %1358 = vrot.lane.b32.xlu0 %v1356, 64
    %v1359 = vpop.permute.xlu0 %1358
    %v1361 = vmul.f32 %v1343, %v1359
    %v1362 = vadd.f32 %v1324, %v141
    %v1363 = vadd.f32 %v1326, %v145
    %v1364 = vxor.u32 %v1362, 2147483648
    %v1365 = vxor.u32 %v1363, 2147483648
    %v1366 = vmul.f32 %v1364, 1.442695
    %v1367 = vpow.pop %v1366
    %v1368 = vmul.f32 %v1365, 1.442695
    %v1369 = vpow.pop %v1368
    %v1370 = vadd.f32 %v1367, 1.0
    %v1371 = vadd.f32 %v1369, 1.0
    %v1372 = vrcp.pop %v1370
    %v1373 = vmul.f32 1.0, %v1372
    %v1374 = vrcp.pop %v1371
    %v1375 = vmul.f32 1.0, %v1374
    %v1376 = vtanh.pop %v1363
    %v1377 = vmul.f32 %v1373, %v1173
    %1379 = vrot.lane.b32.xlu0 %v1376, 64
    %v1380 = vpop.permute.xlu0 %1379
    %v1382 = vmul.f32 %v1373, %v1380
    %1384 = vrot.lane.b32.xlu0 %v1382, 64
    %v1385 = vpop.permute.xlu0 %1384
    %v1387 = vadd.f32 %v1377, %v1385
    %v1388 = vtanh.pop %v1387
    %1390 = vrot.lane.b32.xlu0 %v1388, 64
    %v1391 = vpop.permute.xlu0 %1390
    %v1393 = vmul.f32 %v1375, %v1391
    %1394 = vst.msk [vmem:[#allocation3 + $0x20] sm:$0xff] %vm328, %v1393
    %1396 = vrot.lane.b32.xlu0 %v1393, 64
    %v1397 = vpop.permute.xlu0 %1396
    %v1399 = vsel %vm328, %v1361, %v1397
    %1400 = vmatprep.subr.mxu0 %v29
    %1401 = vmatpush1.msra.mxu0 %v28
    %1402 = vmatprep.subr.mxu0 %v33
    %1403 = vmatpush1.msra.mxu0 %v32
    %1404 = vmatprep.subr.mxu0 %v37
    %1405 = vmatpush1.msra.mxu0 %v36
    %1406 = vmatprep.subr.mxu0 %v41
    %1407 = vmatpush1.msra.mxu0 %v40
    %1408 = vmatprep.subr.mxu0 %v45
    %1409 = vmatpush1.msra.mxu0 %v44
    %1410 = vmatprep.subr.mxu0 %v49
    %1411 = vmatpush1.msra.mxu0 %v48
    %1412 = vmatprep.subr.mxu0 %v53
    %1413 = vmatpush1.msra.mxu0 %v52
    %1414 = vmatprep.subr.mxu0 %v57
    %1415 = vmatpush1.msra.mxu0 %v56
    %1416 = vmatprep.subr.mxu0 %v61
    %1417 = vmatpush1.msra.mxu0 %v60
    %1418 = vmatprep.subr.mxu0 %v65
    %1419 = vmatpush1.msra.mxu0 %v64
    %1420 = vmatprep.subr.mxu0 %v69
    %1421 = vmatpush1.msra.mxu0 %v68
    %1422 = vmatprep.subr.mxu0 %v73
    %1423 = vmatpush1.msra.mxu0 %v72
    %1424 = vmatprep.subr.mxu0 %v77
    %1425 = vmatpush1.msra.mxu0 %v76
    %1426 = vmatprep.subr.mxu0 %v81
    %1427 = vmatpush1.msra.mxu0 %v80
    %1428 = vmatprep.subr.mxu0 %v85
    %1429 = vmatpush1.msra.mxu0 %v84
    %1430 = vmatprep.subr.mxu0 %v89
    %1431 = vmatpush1.msra.mxu0 %v88
    %1432 = vmatprep.subr.mxu0 0.0
    %1433 = vmatpush1.msra.mxu0 0.0
    %1434 = vmatprep.subr.mxu0 0.0
    %1435 = vmatpush1.msra.mxu0 0.0
    %1436 = vmatprep.subr.mxu0 0.0
    %1437 = vmatpush1.msra.mxu0 0.0
    %1438 = vmatprep.subr.mxu0 0.0
    %1439 = vmatpush1.msra.mxu0 0.0
    %1440 = vmatprep.subr.mxu0 0.0
    %1441 = vmatpush1.msra.mxu0 0.0
    %1442 = vmatprep.subr.mxu0 0.0
    %1443 = vmatpush1.msra.mxu0 0.0
    %1444 = vmatprep.subr.mxu0 0.0
    %1445 = vmatpush1.msra.mxu0 0.0
    %1446 = vmatprep.subr.mxu0 0.0
    %1447 = vmatpush1.msra.mxu0 0.0
    %1448 = vmatprep.subr.mxu0 0.0
    %1449 = vmatpush1.msra.mxu0 0.0
    %1450 = vmatprep.subr.mxu0 0.0
    %1451 = vmatpush1.msra.mxu0 0.0
    %1452 = vmatprep.subr.mxu0 0.0
    %1453 = vmatpush1.msra.mxu0 0.0
    %1454 = vmatprep.subr.mxu0 0.0
    %1455 = vmatpush1.msra.mxu0 0.0
    %1456 = vmatprep.subr.mxu0 0.0
    %1457 = vmatpush1.msra.mxu0 0.0
    %1458 = vmatprep.subr.mxu0 0.0
    %1459 = vmatpush1.msra.mxu0 0.0
    %1460 = vmatprep.subr.mxu0 0.0
    %1461 = vmatpush1.msra.mxu0 0.0
    %1462 = vmatprep.subr.mxu0 0.0
    %1463 = vmatpush1.msra.mxu0 0.0
    %1464 = vmatprep.mubr.f32.mxu0 0.0
    %1465 = vmatmul.mubr.f32.gmra.mrb[0].mxu0 %v1399
    %v1466 = vpop.f32.mrb[0].mxu0
    %v1467 = vadd.f32 0.0, %v1466
    %v1468 = vpop.f32.mrb[0].mxu0
    %v1469 = vadd.f32 0.0, %v1468
    %1470 = vdwg.mxu0
    %1471 = vmatprep.subr.mxu0 %v31
    %1472 = vmatpush1.msra.mxu0 %v30
    %1473 = vmatprep.subr.mxu0 %v35
    %1474 = vmatpush1.msra.mxu0 %v34
    %1475 = vmatprep.subr.mxu0 %v39
    %1476 = vmatpush1.msra.mxu0 %v38
    %1477 = vmatprep.subr.mxu0 %v43
    %1478 = vmatpush1.msra.mxu0 %v42
    %1479 = vmatprep.subr.mxu0 %v47
    %1480 = vmatpush1.msra.mxu0 %v46
    %1481 = vmatprep.subr.mxu0 %v51
    %1482 = vmatpush1.msra.mxu0 %v50
    %1483 = vmatprep.subr.mxu0 %v55
    %1484 = vmatpush1.msra.mxu0 %v54
    %1485 = vmatprep.subr.mxu0 %v59
    %1486 = vmatpush1.msra.mxu0 %v58
    %1487 = vmatprep.subr.mxu0 %v63
    %1488 = vmatpush1.msra.mxu0 %v62
    %1489 = vmatprep.subr.mxu0 %v67
    %1490 = vmatpush1.msra.mxu0 %v66
    %1491 = vmatprep.subr.mxu0 %v71
    %1492 = vmatpush1.msra.mxu0 %v70
    %1493 = vmatprep.subr.mxu0 %v75
    %1494 = vmatpush1.msra.mxu0 %v74
    %1495 = vmatprep.subr.mxu0 %v79
    %1496 = vmatpush1.msra.mxu0 %v78
    %1497 = vmatprep.subr.mxu0 %v83
    %1498 = vmatpush1.msra.mxu0 %v82
    %1499 = vmatprep.subr.mxu0 %v87
    %1500 = vmatpush1.msra.mxu0 %v86
    %1501 = vmatprep.subr.mxu0 %v91
    %1502 = vmatpush1.msra.mxu0 %v90
    %1503 = vmatprep.subr.mxu0 0.0
    %1504 = vmatpush1.msra.mxu0 0.0
    %1505 = vmatprep.subr.mxu0 0.0
    %1506 = vmatpush1.msra.mxu0 0.0
    %1507 = vmatprep.subr.mxu0 0.0
    %1508 = vmatpush1.msra.mxu0 0.0
    %1509 = vmatprep.subr.mxu0 0.0
    %1510 = vmatpush1.msra.mxu0 0.0
    %1511 = vmatprep.subr.mxu0 0.0
    %1512 = vmatpush1.msra.mxu0 0.0
    %1513 = vmatprep.subr.mxu0 0.0
    %1514 = vmatpush1.msra.mxu0 0.0
    %1515 = vmatprep.subr.mxu0 0.0
    %1516 = vmatpush1.msra.mxu0 0.0
    %1517 = vmatprep.subr.mxu0 0.0
    %1518 = vmatpush1.msra.mxu0 0.0
    %1519 = vmatprep.subr.mxu0 0.0
    %1520 = vmatpush1.msra.mxu0 0.0
    %1521 = vmatprep.subr.mxu0 0.0
    %1522 = vmatpush1.msra.mxu0 0.0
    %1523 = vmatprep.subr.mxu0 0.0
    %1524 = vmatpush1.msra.mxu0 0.0
    %1525 = vmatprep.subr.mxu0 0.0
    %1526 = vmatpush1.msra.mxu0 0.0
    %1527 = vmatprep.subr.mxu0 0.0
    %1528 = vmatpush1.msra.mxu0 0.0
    %1529 = vmatprep.subr.mxu0 0.0
    %1530 = vmatpush1.msra.mxu0 0.0
    %1531 = vmatprep.subr.mxu0 0.0
    %1532 = vmatpush1.msra.mxu0 0.0
    %1533 = vmatprep.subr.mxu0 0.0
    %1534 = vmatpush1.msra.mxu0 0.0
    %1535 = vmatprep.mubr.f32.mxu0 0.0
    %1536 = vmatmul.mubr.f32.gmra.mrb[0].mxu0 %v1399
    %v1537 = vpop.f32.mrb[0].mxu0
    %v1538 = vadd.f32 0.0, %v1537
    %v1539 = vpop.f32.mrb[0].mxu0
    %v1540 = vadd.f32 0.0, %v1539
    %1541 = vdwg.mxu0
    %v1542 = vld [vmem:[#allocation2 + $0x60] sm:$0xff]
    %v1543 = vld [vmem:[#allocation2 + $0x68] sm:$0xff]
    %v1544 = vadd.f32 %v1542, %v1467
    %v1545 = vadd.f32 %v1543, %v1469
    %v1546 = vxor.u32 %v1544, 2147483648
    %v1547 = vxor.u32 %v1545, 2147483648
    %v1548 = vmul.f32 %v1546, 1.442695
    %v1549 = vpow.pop %v1548
    %v1550 = vmul.f32 %v1547, 1.442695
    %v1551 = vpow.pop %v1550
    %v1552 = vadd.f32 %v1549, 1.0
    %v1553 = vadd.f32 %v1551, 1.0
    %v1554 = vrcp.pop %v1552
    %v1555 = vmul.f32 1.0, %v1554
    %v1556 = vrcp.pop %v1553
    %v1557 = vmul.f32 1.0, %v1556
    %v1558 = vtanh.pop %v1545
    %v1559 = vmul.f32 %v1555, %v1355
    %1561 = vrot.lane.b32.xlu0 %v1558, 64
    %v1562 = vpop.permute.xlu0 %1561
    %v1564 = vmul.f32 %v1555, %v1562
    %1566 = vrot.lane.b32.xlu0 %v1564, 64
    %v1567 = vpop.permute.xlu0 %1566
    %v1569 = vadd.f32 %v1559, %v1567
    %v1570 = vtanh.pop %v1569
    %1572 = vrot.lane.b32.xlu0 %v1570, 64
    %v1573 = vpop.permute.xlu0 %1572
    %v1575 = vmul.f32 %v1557, %v1573
    %v1576 = vadd.f32 %v1538, %v141
    %v1577 = vadd.f32 %v1540, %v145
    %v1578 = vxor.u32 %v1576, 2147483648
    %v1579 = vxor.u32 %v1577, 2147483648
    %v1580 = vmul.f32 %v1578, 1.442695
    %v1581 = vpow.pop %v1580
    %v1582 = vmul.f32 %v1579, 1.442695
    %v1583 = vpow.pop %v1582
    %v1584 = vadd.f32 %v1581, 1.0
    %v1585 = vadd.f32 %v1583, 1.0
    %v1586 = vrcp.pop %v1584
    %v1587 = vmul.f32 1.0, %v1586
    %v1588 = vrcp.pop %v1585
    %v1589 = vmul.f32 1.0, %v1588
    %v1590 = vtanh.pop %v1577
    %v1591 = vmul.f32 %v1587, %v1387
    %1593 = vrot.lane.b32.xlu0 %v1590, 64
    %v1594 = vpop.permute.xlu0 %1593
    %v1596 = vmul.f32 %v1587, %v1594
    %1598 = vrot.lane.b32.xlu0 %v1596, 64
    %v1599 = vpop.permute.xlu0 %1598
    %v1601 = vadd.f32 %v1591, %v1599
    %v1602 = vtanh.pop %v1601
    %1604 = vrot.lane.b32.xlu0 %v1602, 64
    %v1605 = vpop.permute.xlu0 %1604
    %v1607 = vmul.f32 %v1589, %v1605
    %1608 = vst.msk [vmem:[#allocation3 + $0x28] sm:$0xff] %vm328, %v1607
    %1610 = vrot.lane.b32.xlu0 %v1607, 64
    %v1611 = vpop.permute.xlu0 %1610
    %v1613 = vsel %vm328, %v1575, %v1611
    %1614 = vmatprep.subr.mxu0 %v29
    %1615 = vmatpush1.msra.mxu0 %v28
    %1616 = vmatprep.subr.mxu0 %v33
    %1617 = vmatpush1.msra.mxu0 %v32
    %1618 = vmatprep.subr.mxu0 %v37
    %1619 = vmatpush1.msra.mxu0 %v36
    %1620 = vmatprep.subr.mxu0 %v41
    %1621 = vmatpush1.msra.mxu0 %v40
    %1622 = vmatprep.subr.mxu0 %v45
    %1623 = vmatpush1.msra.mxu0 %v44
    %1624 = vmatprep.subr.mxu0 %v49
    %1625 = vmatpush1.msra.mxu0 %v48
    %1626 = vmatprep.subr.mxu0 %v53
    %1627 = vmatpush1.msra.mxu0 %v52
    %1628 = vmatprep.subr.mxu0 %v57
    %1629 = vmatpush1.msra.mxu0 %v56
    %1630 = vmatprep.subr.mxu0 %v61
    %1631 = vmatpush1.msra.mxu0 %v60
    %1632 = vmatprep.subr.mxu0 %v65
    %1633 = vmatpush1.msra.mxu0 %v64
    %1634 = vmatprep.subr.mxu0 %v69
    %1635 = vmatpush1.msra.mxu0 %v68
    %1636 = vmatprep.subr.mxu0 %v73
    %1637 = vmatpush1.msra.mxu0 %v72
    %1638 = vmatprep.subr.mxu0 %v77
    %1639 = vmatpush1.msra.mxu0 %v76
    %1640 = vmatprep.subr.mxu0 %v81
    %1641 = vmatpush1.msra.mxu0 %v80
    %1642 = vmatprep.subr.mxu0 %v85
    %1643 = vmatpush1.msra.mxu0 %v84
    %1644 = vmatprep.subr.mxu0 %v89
    %1645 = vmatpush1.msra.mxu0 %v88
    %1646 = vmatprep.subr.mxu0 0.0
    %1647 = vmatpush1.msra.mxu0 0.0
    %1648 = vmatprep.subr.mxu0 0.0
    %1649 = vmatpush1.msra.mxu0 0.0
    %1650 = vmatprep.subr.mxu0 0.0
    %1651 = vmatpush1.msra.mxu0 0.0
    %1652 = vmatprep.subr.mxu0 0.0
    %1653 = vmatpush1.msra.mxu0 0.0
    %1654 = vmatprep.subr.mxu0 0.0
    %1655 = vmatpush1.msra.mxu0 0.0
    %1656 = vmatprep.subr.mxu0 0.0
    %1657 = vmatpush1.msra.mxu0 0.0
    %1658 = vmatprep.subr.mxu0 0.0
    %1659 = vmatpush1.msra.mxu0 0.0
    %1660 = vmatprep.subr.mxu0 0.0
    %1661 = vmatpush1.msra.mxu0 0.0
    %1662 = vmatprep.subr.mxu0 0.0
    %1663 = vmatpush1.msra.mxu0 0.0
    %1664 = vmatprep.subr.mxu0 0.0
    %1665 = vmatpush1.msra.mxu0 0.0
    %1666 = vmatprep.subr.mxu0 0.0
    %1667 = vmatpush1.msra.mxu0 0.0
    %1668 = vmatprep.subr.mxu0 0.0
    %1669 = vmatpush1.msra.mxu0 0.0
    %1670 = vmatprep.subr.mxu0 0.0
    %1671 = vmatpush1.msra.mxu0 0.0
    %1672 = vmatprep.subr.mxu0 0.0
    %1673 = vmatpush1.msra.mxu0 0.0
    %1674 = vmatprep.subr.mxu0 0.0
    %1675 = vmatpush1.msra.mxu0 0.0
    %1676 = vmatprep.subr.mxu0 0.0
    %1677 = vmatpush1.msra.mxu0 0.0
    %1678 = vmatprep.mubr.f32.mxu0 0.0
    %1679 = vmatmul.mubr.f32.gmra.mrb[0].mxu0 %v1613
    %v1680 = vpop.f32.mrb[0].mxu0
    %v1681 = vadd.f32 0.0, %v1680
    %v1682 = vpop.f32.mrb[0].mxu0
    %v1683 = vadd.f32 0.0, %v1682
    %1684 = vdwg.mxu0
    %1685 = vmatprep.subr.mxu0 %v31
    %1686 = vmatpush1.msra.mxu0 %v30
    %1687 = vmatprep.subr.mxu0 %v35
    %1688 = vmatpush1.msra.mxu0 %v34
    %1689 = vmatprep.subr.mxu0 %v39
    %1690 = vmatpush1.msra.mxu0 %v38
    %1691 = vmatprep.subr.mxu0 %v43
    %1692 = vmatpush1.msra.mxu0 %v42
    %1693 = vmatprep.subr.mxu0 %v47
    %1694 = vmatpush1.msra.mxu0 %v46
    %1695 = vmatprep.subr.mxu0 %v51
    %1696 = vmatpush1.msra.mxu0 %v50
    %1697 = vmatprep.subr.mxu0 %v55
    %1698 = vmatpush1.msra.mxu0 %v54
    %1699 = vmatprep.subr.mxu0 %v59
    %1700 = vmatpush1.msra.mxu0 %v58
    %1701 = vmatprep.subr.mxu0 %v63
    %1702 = vmatpush1.msra.mxu0 %v62
    %1703 = vmatprep.subr.mxu0 %v67
    %1704 = vmatpush1.msra.mxu0 %v66
    %1705 = vmatprep.subr.mxu0 %v71
    %1706 = vmatpush1.msra.mxu0 %v70
    %1707 = vmatprep.subr.mxu0 %v75
    %1708 = vmatpush1.msra.mxu0 %v74
    %1709 = vmatprep.subr.mxu0 %v79
    %1710 = vmatpush1.msra.mxu0 %v78
    %1711 = vmatprep.subr.mxu0 %v83
    %1712 = vmatpush1.msra.mxu0 %v82
    %1713 = vmatprep.subr.mxu0 %v87
    %1714 = vmatpush1.msra.mxu0 %v86
    %1715 = vmatprep.subr.mxu0 %v91
    %1716 = vmatpush1.msra.mxu0 %v90
    %1717 = vmatprep.subr.mxu0 0.0
    %1718 = vmatpush1.msra.mxu0 0.0
    %1719 = vmatprep.subr.mxu0 0.0
    %1720 = vmatpush1.msra.mxu0 0.0
    %1721 = vmatprep.subr.mxu0 0.0
    %1722 = vmatpush1.msra.mxu0 0.0
    %1723 = vmatprep.subr.mxu0 0.0
    %1724 = vmatpush1.msra.mxu0 0.0
    %1725 = vmatprep.subr.mxu0 0.0
    %1726 = vmatpush1.msra.mxu0 0.0
    %1727 = vmatprep.subr.mxu0 0.0
    %1728 = vmatpush1.msra.mxu0 0.0
    %1729 = vmatprep.subr.mxu0 0.0
    %1730 = vmatpush1.msra.mxu0 0.0
    %1731 = vmatprep.subr.mxu0 0.0
    %1732 = vmatpush1.msra.mxu0 0.0
    %1733 = vmatprep.subr.mxu0 0.0
    %1734 = vmatpush1.msra.mxu0 0.0
    %1735 = vmatprep.subr.mxu0 0.0
    %1736 = vmatpush1.msra.mxu0 0.0
    %1737 = vmatprep.subr.mxu0 0.0
    %1738 = vmatpush1.msra.mxu0 0.0
    %1739 = vmatprep.subr.mxu0 0.0
    %1740 = vmatpush1.msra.mxu0 0.0
    %1741 = vmatprep.subr.mxu0 0.0
    %1742 = vmatpush1.msra.mxu0 0.0
    %1743 = vmatprep.subr.mxu0 0.0
    %1744 = vmatpush1.msra.mxu0 0.0
    %1745 = vmatprep.subr.mxu0 0.0
    %1746 = vmatpush1.msra.mxu0 0.0
    %1747 = vmatprep.subr.mxu0 0.0
    %1748 = vmatpush1.msra.mxu0 0.0
    %1749 = vmatprep.mubr.f32.mxu0 0.0
    %1750 = vmatmul.mubr.f32.gmra.mrb[0].mxu0 %v1613
    %v1751 = vpop.f32.mrb[0].mxu0
    %v1752 = vadd.f32 0.0, %v1751
    %v1753 = vpop.f32.mrb[0].mxu0
    %v1754 = vadd.f32 0.0, %v1753
    %1755 = vdwg.mxu0
    %v1756 = vld [vmem:[#allocation2 + $0x70] sm:$0xff]
    %v1757 = vld [vmem:[#allocation2 + $0x78] sm:$0xff]
    %v1758 = vadd.f32 %v1756, %v1681
    %v1759 = vadd.f32 %v1757, %v1683
    %v1760 = vxor.u32 %v1758, 2147483648
    %v1761 = vxor.u32 %v1759, 2147483648
    %v1762 = vmul.f32 %v1760, 1.442695
    %v1763 = vpow.pop %v1762
    %v1764 = vmul.f32 %v1761, 1.442695
    %v1765 = vpow.pop %v1764
    %v1766 = vadd.f32 %v1763, 1.0
    %v1767 = vadd.f32 %v1765, 1.0
    %v1768 = vrcp.pop %v1766
    %v1769 = vmul.f32 1.0, %v1768
    %v1770 = vrcp.pop %v1767
    %v1771 = vmul.f32 1.0, %v1770
    %v1772 = vtanh.pop %v1759
    %v1773 = vmul.f32 %v1769, %v1569
    %1775 = vrot.lane.b32.xlu0 %v1772, 64
    %v1776 = vpop.permute.xlu0 %1775
    %v1778 = vmul.f32 %v1769, %v1776
    %1780 = vrot.lane.b32.xlu0 %v1778, 64
    %v1781 = vpop.permute.xlu0 %1780
    %v1783 = vadd.f32 %v1773, %v1781
    %v1784 = vtanh.pop %v1783
    %1786 = vrot.lane.b32.xlu0 %v1784, 64
    %v1787 = vpop.permute.xlu0 %1786
    %v1789 = vmul.f32 %v1771, %v1787
    %v1790 = vadd.f32 %v1752, %v141
    %v1791 = vadd.f32 %v1754, %v145
    %v1792 = vxor.u32 %v1790, 2147483648
    %v1793 = vxor.u32 %v1791, 2147483648
    %v1794 = vmul.f32 %v1792, 1.442695
    %v1795 = vpow.pop %v1794
    %v1796 = vmul.f32 %v1793, 1.442695
    %v1797 = vpow.pop %v1796
    %v1798 = vadd.f32 %v1795, 1.0
    %v1799 = vadd.f32 %v1797, 1.0
    %v1800 = vrcp.pop %v1798
    %v1801 = vmul.f32 1.0, %v1800
    %v1802 = vrcp.pop %v1799
    %v1803 = vmul.f32 1.0, %v1802
    %v1804 = vtanh.pop %v1791
    %v1805 = vmul.f32 %v1801, %v1601
    %1807 = vrot.lane.b32.xlu0 %v1804, 64
    %v1808 = vpop.permute.xlu0 %1807
    %v1810 = vmul.f32 %v1801, %v1808
    %1812 = vrot.lane.b32.xlu0 %v1810, 64
    %v1813 = vpop.permute.xlu0 %1812
    %v1815 = vadd.f32 %v1805, %v1813
    %v1816 = vtanh.pop %v1815
    %1818 = vrot.lane.b32.xlu0 %v1816, 64
    %v1819 = vpop.permute.xlu0 %1818
    %v1821 = vmul.f32 %v1803, %v1819
    %1822 = vst.msk [vmem:[#allocation3 + $0x30] sm:$0xff] %vm328, %v1821
    %1824 = vrot.lane.b32.xlu0 %v1821, 64
    %v1825 = vpop.permute.xlu0 %1824
    %v1827 = vsel %vm328, %v1789, %v1825
    %1828 = vmatprep.subr.mxu0 %v31
    %1829 = vmatpush1.msra.mxu0 %v30
    %1830 = vmatprep.subr.mxu0 %v35
    %1831 = vmatpush1.msra.mxu0 %v34
    %1832 = vmatprep.subr.mxu0 %v39
    %1833 = vmatpush1.msra.mxu0 %v38
    %1834 = vmatprep.subr.mxu0 %v43
    %1835 = vmatpush1.msra.mxu0 %v42
    %1836 = vmatprep.subr.mxu0 %v47
    %1837 = vmatpush1.msra.mxu0 %v46
    %1838 = vmatprep.subr.mxu0 %v51
    %1839 = vmatpush1.msra.mxu0 %v50
    %1840 = vmatprep.subr.mxu0 %v55
    %1841 = vmatpush1.msra.mxu0 %v54
    %1842 = vmatprep.subr.mxu0 %v59
    %1843 = vmatpush1.msra.mxu0 %v58
    %1844 = vmatprep.subr.mxu0 %v63
    %1845 = vmatpush1.msra.mxu0 %v62
    %1846 = vmatprep.subr.mxu0 %v67
    %1847 = vmatpush1.msra.mxu0 %v66
    %1848 = vmatprep.subr.mxu0 %v71
    %1849 = vmatpush1.msra.mxu0 %v70
    %1850 = vmatprep.subr.mxu0 %v75
    %1851 = vmatpush1.msra.mxu0 %v74
    %1852 = vmatprep.subr.mxu0 %v79
    %1853 = vmatpush1.msra.mxu0 %v78
    %1854 = vmatprep.subr.mxu0 %v83
    %1855 = vmatpush1.msra.mxu0 %v82
    %1856 = vmatprep.subr.mxu0 %v87
    %1857 = vmatpush1.msra.mxu0 %v86
    %1858 = vmatprep.subr.mxu0 %v91
    %1859 = vmatpush1.msra.mxu0 %v90
    %1860 = vmatprep.subr.mxu0 0.0
    %1861 = vmatpush1.msra.mxu0 0.0
    %1862 = vmatprep.subr.mxu0 0.0
    %1863 = vmatpush1.msra.mxu0 0.0
    %1864 = vmatprep.subr.mxu0 0.0
    %1865 = vmatpush1.msra.mxu0 0.0
    %1866 = vmatprep.subr.mxu0 0.0
    %1867 = vmatpush1.msra.mxu0 0.0
    %1868 = vmatprep.subr.mxu0 0.0
    %1869 = vmatpush1.msra.mxu0 0.0
    %1870 = vmatprep.subr.mxu0 0.0
    %1871 = vmatpush1.msra.mxu0 0.0
    %1872 = vmatprep.subr.mxu0 0.0
    %1873 = vmatpush1.msra.mxu0 0.0
    %1874 = vmatprep.subr.mxu0 0.0
    %1875 = vmatpush1.msra.mxu0 0.0
    %1876 = vmatprep.subr.mxu0 0.0
    %1877 = vmatpush1.msra.mxu0 0.0
    %1878 = vmatprep.subr.mxu0 0.0
    %1879 = vmatpush1.msra.mxu0 0.0
    %1880 = vmatprep.subr.mxu0 0.0
    %1881 = vmatpush1.msra.mxu0 0.0
    %1882 = vmatprep.subr.mxu0 0.0
    %1883 = vmatpush1.msra.mxu0 0.0
    %1884 = vmatprep.subr.mxu0 0.0
    %1885 = vmatpush1.msra.mxu0 0.0
    %1886 = vmatprep.subr.mxu0 0.0
    %1887 = vmatpush1.msra.mxu0 0.0
    %1888 = vmatprep.subr.mxu0 0.0
    %1889 = vmatpush1.msra.mxu0 0.0
    %1890 = vmatprep.subr.mxu0 0.0
    %1891 = vmatpush1.msra.mxu0 0.0
    %1892 = vmatprep.mubr.f32.mxu0 0.0
    %1893 = vmatmul.mubr.f32.gmra.mrb[0].mxu0 %v1827
    %v1894 = vpop.f32.mrb[0].mxu0
    %v1895 = vadd.f32 0.0, %v1894
    %v1896 = vpop.f32.mrb[0].mxu0
    %v1897 = vadd.f32 0.0, %v1896
    %1898 = vdwg.mxu0
    %v1899 = vadd.f32 %v1895, %v141
    %v1900 = vadd.f32 %v1897, %v145
    %v1901 = vxor.u32 %v1899, 2147483648
    %v1902 = vxor.u32 %v1900, 2147483648
    %v1903 = vmul.f32 %v1901, 1.442695
    %v1904 = vpow.pop %v1903
    %v1905 = vmul.f32 %v1902, 1.442695
    %v1906 = vpow.pop %v1905
    %v1907 = vadd.f32 %v1904, 1.0
    %v1908 = vadd.f32 %v1906, 1.0
    %v1909 = vrcp.pop %v1907
    %v1910 = vmul.f32 1.0, %v1909
    %v1911 = vrcp.pop %v1908
    %v1912 = vmul.f32 1.0, %v1911
    %v1913 = vtanh.pop %v1900
    %v1914 = vmul.f32 %v1910, %v1815
    %1916 = vrot.lane.b32.xlu0 %v1913, 64
    %v1917 = vpop.permute.xlu0 %1916
    %v1919 = vmul.f32 %v1910, %v1917
    %1921 = vrot.lane.b32.xlu0 %v1919, 64
    %v1922 = vpop.permute.xlu0 %1921
    %v1924 = vadd.f32 %v1914, %v1922
    %v1925 = vtanh.pop %v1924
    %1927 = vrot.lane.b32.xlu0 %v1925, 64
    %v1928 = vpop.permute.xlu0 %1927
    %v1930 = vmul.f32 %v1912, %v1928
    %1931 = vst.msk [vmem:[#allocation3 + $0x38] sm:$0xff] %vm328, %v1930
    %1932 = vst.msk [vmem:[%s3] sm:$0xff] %vm328, %v1789
    %1934 = vrot.lane.b32.xlu0 %v1783, 64
    %v1935 = vpop.permute.xlu0 %1934
    %1937 = vst.msk [vmem:[%s4] sm:$0xff] %vm328, %v1935
    %s1938 = scalar_lea.vmem %s3, 8
    %1939 = vst.msk [vmem:[%s1938] sm:$0xff] %vm328, %v1930
    %1941 = vrot.lane.b32.xlu0 %v1924, 64
    %v1942 = vpop.permute.xlu0 %1941
    %s1944 = scalar_lea.vmem %s4, 8
    %1945 = vst.msk [vmem:[%s1944] sm:$0xff] %vm328, %v1942
    %v1946 = vld [vmem:[#allocation3] sm:$0xff]
    %v1947 = vld [vmem:[#allocation3 + $0x8] sm:$0xff]
    %v1948 = vld [vmem:[#allocation3 + $0x10] sm:$0xff]
    %v1949 = vld [vmem:[#allocation3 + $0x18] sm:$0xff]
    %v1950 = vld [vmem:[#allocation3 + $0x20] sm:$0xff]
    %v1951 = vld [vmem:[#allocation3 + $0x28] sm:$0xff]
    %v1952 = vld [vmem:[#allocation3 + $0x30] sm:$0xff]
    %v1953 = vld [vmem:[#allocation3 + $0x38] sm:$0xff]
    %v1955 = vsel %vm328, %v1946, 0
    %v1958 = vsel %vm328, %v1947, 0
    %v1961 = vsel %vm328, %v1948, 0
    %v1964 = vsel %vm328, %v1949, 0
    %v1967 = vsel %vm328, %v1950, 0
    %v1970 = vsel %vm328, %v1951, 0
    %v1973 = vsel %vm328, %v1952, 0
    %v1976 = vsel %vm328, %v1953, 0
    %1978 = vmatprep.subr.mxu0 0.0
    %1979 = vmatpush1.msra.mxu0 %v124
    %1980 = vmatprep.subr.mxu0 0.0
    %1981 = vmatpush1.msra.mxu0 %v125
    %1982 = vmatprep.subr.mxu0 0.0
    %1983 = vmatpush1.msra.mxu0 %v126
    %1984 = vmatprep.subr.mxu0 0.0
    %1985 = vmatpush1.msra.mxu0 %v127
    %1986 = vmatprep.subr.mxu0 0.0
    %1987 = vmatpush1.msra.mxu0 %v128
    %1988 = vmatprep.subr.mxu0 0.0
    %1989 = vmatpush1.msra.mxu0 %v129
    %1990 = vmatprep.subr.mxu0 0.0
    %1991 = vmatpush1.msra.mxu0 %v130
    %1992 = vmatprep.subr.mxu0 0.0
    %1993 = vmatpush1.msra.mxu0 %v131
    %1994 = vmatprep.subr.mxu0 0.0
    %1995 = vmatpush1.msra.mxu0 0.0
    %1996 = vmatprep.subr.mxu0 0.0
    %1997 = vmatpush1.msra.mxu0 0.0
    %1998 = vmatprep.subr.mxu0 0.0
    %1999 = vmatpush1.msra.mxu0 0.0
    %2000 = vmatprep.subr.mxu0 0.0
    %2001 = vmatpush1.msra.mxu0 0.0
    %2002 = vmatprep.subr.mxu0 0.0
    %2003 = vmatpush1.msra.mxu0 0.0
    %2004 = vmatprep.subr.mxu0 0.0
    %2005 = vmatpush1.msra.mxu0 0.0
    %2006 = vmatprep.subr.mxu0 0.0
    %2007 = vmatpush1.msra.mxu0 0.0
    %2008 = vmatprep.subr.mxu0 0.0
    %2009 = vmatpush1.msra.mxu0 0.0
    %2010 = vmatprep.subr.mxu0 0.0
    %2011 = vmatpush1.msra.mxu0 0.0
    %2012 = vmatprep.subr.mxu0 0.0
    %2013 = vmatpush1.msra.mxu0 0.0
    %2014 = vmatprep.subr.mxu0 0.0
    %2015 = vmatpush1.msra.mxu0 0.0
    %2016 = vmatprep.subr.mxu0 0.0
    %2017 = vmatpush1.msra.mxu0 0.0
    %2018 = vmatprep.subr.mxu0 0.0
    %2019 = vmatpush1.msra.mxu0 0.0
    %2020 = vmatprep.subr.mxu0 0.0
    %2021 = vmatpush1.msra.mxu0 0.0
    %2022 = vmatprep.subr.mxu0 0.0
    %2023 = vmatpush1.msra.mxu0 0.0
    %2024 = vmatprep.subr.mxu0 0.0
    %2025 = vmatpush1.msra.mxu0 0.0
    %2026 = vmatprep.subr.mxu0 0.0
    %2027 = vmatpush1.msra.mxu0 0.0
    %2028 = vmatprep.subr.mxu0 0.0
    %2029 = vmatpush1.msra.mxu0 0.0
    %2030 = vmatprep.subr.mxu0 0.0
    %2031 = vmatpush1.msra.mxu0 0.0
    %2032 = vmatprep.subr.mxu0 0.0
    %2033 = vmatpush1.msra.mxu0 0.0
    %2034 = vmatprep.subr.mxu0 0.0
    %2035 = vmatpush1.msra.mxu0 0.0
    %2036 = vmatprep.subr.mxu0 0.0
    %2037 = vmatpush1.msra.mxu0 0.0
    %2038 = vmatprep.subr.mxu0 0.0
    %2039 = vmatpush1.msra.mxu0 0.0
    %2040 = vmatprep.subr.mxu0 0.0
    %2041 = vmatpush1.msra.mxu0 0.0
    %2042 = vmatprep.mubr.f32.mxu0 0.0
    %2043 = vmatmul.mubr.f32.gmra.mrb[0].mxu0 %v1955
    %v2044 = vpop.f32.mrb[0].mxu0
    %v2045 = vadd.f32 %v136, %v2044
    %v2046 = vpop.f32.mrb[0].mxu0
    %2047 = vmatprep.mubr.f32.mxu0 0.0
    %2048 = vmatmul.mubr.f32.gmra.mrb[0].mxu0 %v1958
    %v2049 = vpop.f32.mrb[0].mxu0
    %v2050 = vadd.f32 %v136, %v2049
    %v2051 = vpop.f32.mrb[0].mxu0
    %2052 = vmatprep.mubr.f32.mxu0 0.0
    %2053 = vmatmul.mubr.f32.gmra.mrb[0].mxu0 %v1961
    %v2054 = vpop.f32.mrb[0].mxu0
    %v2055 = vadd.f32 %v136, %v2054
    %v2056 = vpop.f32.mrb[0].mxu0
    %2057 = vmatprep.mubr.f32.mxu0 0.0
    %2058 = vmatmul.mubr.f32.gmra.mrb[0].mxu0 %v1964
    %v2059 = vpop.f32.mrb[0].mxu0
    %v2060 = vadd.f32 %v136, %v2059
    %v2061 = vpop.f32.mrb[0].mxu0
    %2062 = vmatprep.mubr.f32.mxu0 0.0
    %2063 = vmatmul.mubr.f32.gmra.mrb[0].mxu0 %v1967
    %v2064 = vpop.f32.mrb[0].mxu0
    %v2065 = vadd.f32 %v136, %v2064
    %v2066 = vpop.f32.mrb[0].mxu0
    %2067 = vmatprep.mubr.f32.mxu0 0.0
    %2068 = vmatmul.mubr.f32.gmra.mrb[0].mxu0 %v1970
    %v2069 = vpop.f32.mrb[0].mxu0
    %v2070 = vadd.f32 %v136, %v2069
    %v2071 = vpop.f32.mrb[0].mxu0
    %2072 = vmatprep.mubr.f32.mxu0 0.0
    %2073 = vmatmul.mubr.f32.gmra.mrb[0].mxu0 %v1973
    %v2074 = vpop.f32.mrb[0].mxu0
    %v2075 = vadd.f32 %v136, %v2074
    %v2076 = vpop.f32.mrb[0].mxu0
    %2077 = vmatprep.mubr.f32.mxu0 0.0
    %2078 = vmatmul.mubr.f32.gmra.mrb[0].mxu0 %v1976
    %v2079 = vpop.f32.mrb[0].mxu0
    %v2080 = vadd.f32 %v136, %v2079
    %v2081 = vpop.f32.mrb[0].mxu0
    %2082 = vdwg.mxu0
    %2083 = vst [vmem:[%s2] sm:$0xff] %v2045
    %2084 = vst [vmem:[%s2 + $0x8] sm:$0xff] %v2050
    %2085 = vst [vmem:[%s2 + $0x10] sm:$0xff] %v2055
    %2086 = vst [vmem:[%s2 + $0x18] sm:$0xff] %v2060
    %2087 = vst [vmem:[%s2 + $0x20] sm:$0xff] %v2065
    %2088 = vst [vmem:[%s2 + $0x28] sm:$0xff] %v2070
    %2089 = vst [vmem:[%s2 + $0x30] sm:$0xff] %v2075
    %2090 = vst [vmem:[%s2 + $0x38] sm:$0xff] %v2080
    // Predicated region
    $region14: #{lstm1_forward.1} parent=1 // pred_check
      _
    $region15: #{lstm1_forward.1} parent=1 // pred_check_branch
      %2092 = sbr.rel (0) target = $region17
    $region16: #{lstm1_forward.1} parent=1 // pred_region
      _
    $region17: #{lstm1_forward.1} parent=1 // pred_fallthru
      _
    // Predicated region
    $region18: #{lstm1_forward.1} parent=1 // pred_check
      _
    $region19: #{lstm1_forward.1} parent=1 // pred_check_branch
      %2094 = sbr.rel (0) target = $region21
    $region20: #{lstm1_forward.1} parent=1 // pred_region
      _
    $region21: #{lstm1_forward.1} parent=1 // pred_fallthru
      _
    // Predicated region
    $region22: #{lstm1_forward.1} parent=1 // pred_check
      _
    $region23: #{lstm1_forward.1} parent=1 // pred_check_branch
      %2096 = sbr.rel (0) target = $region25
    $region24: #{lstm1_forward.1} parent=1 // pred_region
      _
    $region25: #{lstm1_forward.1} parent=1 // pred_fallthru
      _
    // Predicated region
    $region26: #{lstm1_forward.1} parent=1 // pred_check
      _
    $region27: #{lstm1_forward.1} parent=1 // pred_check_branch
      %2098 = sbr.rel (0) target = $region29
    $region28: #{lstm1_forward.1} parent=1 // pred_region
      _
    $region29: #{lstm1_forward.1} parent=1 // pred_fallthru
      _
    // Predicated region
    $region30: #{lstm1_forward.1} parent=1 // pred_check
      _
    $region31: #{lstm1_forward.1} parent=1 // pred_check_branch
      %2100 = sbr.rel (0) target = $region33
    $region32: #{lstm1_forward.1} parent=1 // pred_region
      _
    $region33: #{lstm1_forward.1} parent=1 // pred_fallthru
      _
    // Predicated region
    $region34: #{lstm1_forward.1} parent=1 // pred_check
      _
    $region35: #{lstm1_forward.1} parent=1 // pred_check_branch
      %2102 = sbr.rel (0) target = $region37
    $region36: #{lstm1_forward.1} parent=1 // pred_region
      _
    $region37: #{lstm1_forward.1} parent=1 // pred_fallthru
      _
    %2103 = vsyncpa [#allocation5], 1

</llo_original>
